<compile_context>
chip_gen: v7x
topology: tpu7x:2x2x1
jax: 0.10.0
libtpu: 0.0.40
codegen_flags: <defaults>
</compile_context>

<pallas_src>
import jax
import jax.numpy as jnp
from jax import lax
from jax.experimental import pallas as pl
from jax.experimental.pallas import tpu as pltpu


def _round_up(n, m):
    return -(-n // m) * m


def neural_grid_kernel(x_ref, w0_ref, w1_ref, w2_ref, b_ref, o_ref):
    # x_ref : (TB, Hp) packed activations: TB sublane rows, each holding
    #                  P = Hp // H independent instances along lanes.
    # w*_ref/b_ref : (W, Hp) packed per-column parameters (see prepare_params):
    #   w0[j, L] = w_inner(m, j)
    #   w1[j, L] = w_inner(m-1, j) if m >= 1 else 0     (causal mask folded in)
    #   w2[j, L] = w_inner(m-2, j) if m >= 2 else 0
    #   b [j, L] = b(m, j)
    #   where m = L mod H within each packed instance; dead/padded lanes are 0.
    # o_ref : (TB, Hp) packed outputs.
    Wd = w0_ref.shape[0]

    def body(j, v):
        # The rolls depend only on the previous sin output, so the XLU
        # rotations overlap the v*w0 VPU multiply.  The roll's wraparound and
        # cross-instance leakage are killed by the zero lanes pre-folded into
        # w1/w2, so no per-column mask multiplies remain on the serial chain.
        r1 = pltpu.roll(v, 1, axis=1)
        r2 = pltpu.roll(v, 2, axis=1)
        z = (v * w0_ref[pl.ds(j, 1), :]
             + r1 * w1_ref[pl.ds(j, 1), :]
             + r2 * w2_ref[pl.ds(j, 1), :]
             + b_ref[pl.ds(j, 1), :])
        return jnp.sin(z)

    # Strictly serial column recurrence; W is small -> full unroll so the LLO
    # scheduler sees every iteration.
    o_ref[...] = lax.fori_loop(0, Wd, body, x_ref[...], unroll=True)


def prepare_params(w_full, b):
    """One-time packing of the static parameters (hoisted off the per-call path).

    w_full: (H+2, W) zero-padded weights as stored by the torch module.
    b:      (H, W)   biases.
    Returns the lane-packed, pre-rolled, pre-masked parameter planes plus the
    packing geometry.
    """
    H, Wd = b.shape
    if H <= 128:
        P = 128 // H                 # instances packed per 128-lane group
        Hp = 128
    else:
        P = 1
        Hp = _round_up(H, 128)

    w_inner = jnp.asarray(w_full, jnp.float32)[1:H + 1]   # (H, W), drop pad rows
    wt = w_inner.T                                         # (W, H): row j = column j
    bt = jnp.asarray(b, jnp.float32).T                     # (W, H)

    def shift(a, k):   # a[:, m] -> a[:, m-k], zeros where m < k (causal mask)
        if k >= a.shape[1]:
            return jnp.zeros_like(a)
        return jnp.pad(a[:, :a.shape[1] - k], ((0, 0), (k, 0)))

    def pack(a):       # (W, H) -> (W, Hp): tile P instances along lanes, pad rest 0
        tiled = jnp.tile(a, (1, P))
        return jnp.pad(tiled, ((0, 0), (0, Hp - P * H)))

    return {
        "w0": pack(wt),
        "w1": pack(shift(wt, 1)),    # pre-rolled + pre-masked taps
        "w2": pack(shift(wt, 2)),
        "b":  pack(bt),
        "H": H, "W": Wd, "P": P, "Hp": Hp,
    }


def neural_grid_forward(x, params, *, batch_block=64):
    """x: (H,), (1, H) or (B, H) independent inputs sharing the prepared params.

    Returns (B, H) float32; B=1 reproduces the torch module's forward exactly.
    """
    H, Wd, P, Hp = params["H"], params["W"], params["P"], params["Hp"]
    x2 = jnp.asarray(x, jnp.float32).reshape(-1, H)
    Bn = x2.shape[0]

    # Lane-pack P instances per sublane row, then tile rows along sublanes.
    rows = _round_up(Bn, P) // P                              # packed rows needed
    TB = _round_up(max(8, min(batch_block, _round_up(rows, 8))), 8)
    Bp = _round_up(rows, TB)                                  # exact multiple of TB
    # Padded instances / rows compute sin(garbage) on zero inputs; they are
    # sliced off below and cannot leak into valid lanes because the packed
    # w1/w2 are zero at every instance boundary.

    x_p = jnp.zeros((Bp, Hp), jnp.float32)
    x_p = x_p.at[:rows, :P * H].set(
        jnp.pad(x2, ((0, rows * P - Bn), (0, 0))).reshape(rows, P * H))

    shared = pl.BlockSpec((Wd, Hp), lambda i: (0, 0))         # static params
    out = pl.pallas_call(
        neural_grid_kernel,
        out_shape=jax.ShapeDtypeStruct((Bp, Hp), jnp.float32),
        grid=(Bp // TB,),
        in_specs=[pl.BlockSpec((TB, Hp), lambda i: (i, 0)),   # batch tile
                  shared, shared, shared, shared],
        out_specs=pl.BlockSpec((TB, Hp), lambda i: (i, 0)),
        compiler_params=pltpu.CompilerParams(
            dimension_semantics=("parallel",)),   # v7x: batch splits across TCs
        # Tiles are KiB-scale here; set vmem_limit_bytes only if TB/Hp/W are
        # scaled far beyond these sizes (v5e scoped default is 16 MiB).
    )(x_p, params["w0"], params["w1"], params["w2"], params["b"])

    return out[:rows, :P * H].reshape(rows * P, H)[:Bn]


def reference_forward(x, w_full, b):
    """Batched pure-JAX transcription of the PyTorch double loop."""
    H, Wd = b.shape
    v = jnp.asarray(x, jnp.float32).reshape(-1, H)
    w_inner = jnp.asarray(w_full, jnp.float32)[1:H + 1]
    for j in range(Wd):
        t = v * w_inner[:, j]
        t1 = jnp.pad(t[:, :-1], ((0, 0), (1, 0)))
        t2 = jnp.pad(t[:, :-2], ((0, 0), (2, 0)))
        v = jnp.sin(t + t1 + t2 + b[:, j])
    return v


if __name__ == "__main__":
    H, W = 16, 16                      # grid_height, grid_width
    B = 20                             # independent instances sharing (w, b)
    key = jax.random.PRNGKey(0)
    kx, kw, kb = jax.random.split(key, 3)

    # xavier_init(size=(H, W), fan_in=3, fan_out=3): uniform, limit = 1.0
    limit = (6.0 / (3 + 3)) ** 0.5
    w = jax.random.uniform(kw, (H, W), jnp.float32, -limit, limit)
    w_full = jnp.pad(w, ((1, 1), (0, 0)))       # F.pad(w, [0,0,1,1]) -> (H+2, W)
    # Module __init__ sets b = 0; use nonzero values to exercise the bias path
    # (forward semantics are identical for any b).
    b = 0.1 * jax.random.normal(kb, (H, W), jnp.float32)
    x = jax.random.normal(kx, (B, H), jnp.float32)

    params = prepare_params(w_full, b)          # one-time static-param packing

    out = neural_grid_forward(x, params)
    out = jax.block_until_ready(out)

    ref = reference_forward(x, w_full, b)
    assert out.shape == (B, H) and out.dtype == jnp.float32
    assert jnp.allclose(out, ref, atol=1e-5, rtol=1e-5), (out, ref)

    # Original-module path: a single (1, H) instance.
    out1 = jax.block_until_ready(neural_grid_forward(x[:1], params))
    assert out1.shape == (1, H)
    assert jnp.allclose(out1, ref[:1], atol=1e-5, rtol=1e-5)

    print("KERNEL_OK")
</pallas_src>

<mosaic_0001>
module attributes {stable_mosaic.version = 11 : i64} {
  func.func @neural_grid_kernel(%arg0: i32, %arg1: memref<8x128xf32, #tpu.memory_space<vmem>>, %arg2: memref<16x128xf32, #tpu.memory_space<vmem>>, %arg3: memref<16x128xf32, #tpu.memory_space<vmem>>, %arg4: memref<16x128xf32, #tpu.memory_space<vmem>>, %arg5: memref<16x128xf32, #tpu.memory_space<vmem>>, %arg6: memref<8x128xf32, #tpu.memory_space<vmem>>) attributes {dimension_semantics = [#tpu.dimension_semantics<parallel>], iteration_bounds = array<i64: 1>, scalar_prefetch = 0 : i64, scratch_operands = 0 : i64, tpu.core_type = #tpu.core_type<tc>, window_params = [{transform_indices = @transform_0, window_bounds = array<i64: 8, 128>}, {pipeline_mode = #tpu.pipeline_mode<synchronous>, transform_indices = @transform_1, window_bounds = array<i64: 16, 128>}, {pipeline_mode = #tpu.pipeline_mode<synchronous>, transform_indices = @transform_2, window_bounds = array<i64: 16, 128>}, {pipeline_mode = #tpu.pipeline_mode<synchronous>, transform_indices = @transform_3, window_bounds = array<i64: 16, 128>}, {pipeline_mode = #tpu.pipeline_mode<synchronous>, transform_indices = @transform_4, window_bounds = array<i64: 16, 128>}, {transform_indices = @transform_5, window_bounds = array<i64: 8, 128>}]} {
    %c0 = arith.constant 0 : index
    %c0_0 = arith.constant 0 : index
    %0 = vector.load %arg1[%c0, %c0_0] : memref<8x128xf32, #tpu.memory_space<vmem>>, vector<8x128xf32>
    %c0_i32 = arith.constant 0 : i32
    %c1_i32 = arith.constant 1 : i32
    %1 = tpu.dynamic_rotate %0 by %c1_i32 dim 1 : vector<8x128xf32>, i32 -> vector<8x128xf32>
    %c2_i32 = arith.constant 2 : i32
    %2 = tpu.dynamic_rotate %0 by %c2_i32 dim 1 : vector<8x128xf32>, i32 -> vector<8x128xf32>
    %3 = arith.index_cast %c0_i32 : i32 to index
    %c0_1 = arith.constant 0 : index
    %4 = vector.load %arg2[%3, %c0_1] : memref<16x128xf32, #tpu.memory_space<vmem>>, vector<1x128xf32>
    %5 = vector.broadcast %4 : vector<1x128xf32> to vector<8x128xf32>
    %6 = arith.mulf %0, %5 : vector<8x128xf32>
    %7 = arith.index_cast %c0_i32 : i32 to index
    %c0_2 = arith.constant 0 : index
    %8 = vector.load %arg3[%7, %c0_2] : memref<16x128xf32, #tpu.memory_space<vmem>>, vector<1x128xf32>
    %9 = vector.broadcast %8 : vector<1x128xf32> to vector<8x128xf32>
    %10 = arith.mulf %1, %9 : vector<8x128xf32>
    %11 = arith.addf %6, %10 : vector<8x128xf32>
    %12 = arith.index_cast %c0_i32 : i32 to index
    %c0_3 = arith.constant 0 : index
    %13 = vector.load %arg4[%12, %c0_3] : memref<16x128xf32, #tpu.memory_space<vmem>>, vector<1x128xf32>
    %14 = vector.broadcast %13 : vector<1x128xf32> to vector<8x128xf32>
    %15 = arith.mulf %2, %14 : vector<8x128xf32>
    %16 = arith.addf %11, %15 : vector<8x128xf32>
    %17 = arith.index_cast %c0_i32 : i32 to index
    %c0_4 = arith.constant 0 : index
    %18 = vector.load %arg5[%17, %c0_4] : memref<16x128xf32, #tpu.memory_space<vmem>>, vector<1x128xf32>
    %19 = vector.broadcast %18 : vector<1x128xf32> to vector<8x128xf32>
    %20 = arith.addf %16, %19 : vector<8x128xf32>
    %21 = math.sin %20 : vector<8x128xf32>
    %c1_i32_5 = arith.constant 1 : i32
    %c1_i32_6 = arith.constant 1 : i32
    %22 = tpu.dynamic_rotate %21 by %c1_i32_6 dim 1 : vector<8x128xf32>, i32 -> vector<8x128xf32>
    %c2_i32_7 = arith.constant 2 : i32
    %23 = tpu.dynamic_rotate %21 by %c2_i32_7 dim 1 : vector<8x128xf32>, i32 -> vector<8x128xf32>
    %24 = arith.index_cast %c1_i32_5 : i32 to index
    %c0_8 = arith.constant 0 : index
    %25 = vector.load %arg2[%24, %c0_8] : memref<16x128xf32, #tpu.memory_space<vmem>>, vector<1x128xf32>
    %26 = vector.broadcast %25 : vector<1x128xf32> to vector<8x128xf32>
    %27 = arith.mulf %21, %26 : vector<8x128xf32>
    %28 = arith.index_cast %c1_i32_5 : i32 to index
    %c0_9 = arith.constant 0 : index
    %29 = vector.load %arg3[%28, %c0_9] : memref<16x128xf32, #tpu.memory_space<vmem>>, vector<1x128xf32>
    %30 = vector.broadcast %29 : vector<1x128xf32> to vector<8x128xf32>
    %31 = arith.mulf %22, %30 : vector<8x128xf32>
    %32 = arith.addf %27, %31 : vector<8x128xf32>
    %33 = arith.index_cast %c1_i32_5 : i32 to index
    %c0_10 = arith.constant 0 : index
    %34 = vector.load %arg4[%33, %c0_10] : memref<16x128xf32, #tpu.memory_space<vmem>>, vector<1x128xf32>
    %35 = vector.broadcast %34 : vector<1x128xf32> to vector<8x128xf32>
    %36 = arith.mulf %23, %35 : vector<8x128xf32>
    %37 = arith.addf %32, %36 : vector<8x128xf32>
    %38 = arith.index_cast %c1_i32_5 : i32 to index
    %c0_11 = arith.constant 0 : index
    %39 = vector.load %arg5[%38, %c0_11] : memref<16x128xf32, #tpu.memory_space<vmem>>, vector<1x128xf32>
    %40 = vector.broadcast %39 : vector<1x128xf32> to vector<8x128xf32>
    %41 = arith.addf %37, %40 : vector<8x128xf32>
    %42 = math.sin %41 : vector<8x128xf32>
    %c2_i32_12 = arith.constant 2 : i32
    %c1_i32_13 = arith.constant 1 : i32
    %43 = tpu.dynamic_rotate %42 by %c1_i32_13 dim 1 : vector<8x128xf32>, i32 -> vector<8x128xf32>
    %c2_i32_14 = arith.constant 2 : i32
    %44 = tpu.dynamic_rotate %42 by %c2_i32_14 dim 1 : vector<8x128xf32>, i32 -> vector<8x128xf32>
    %45 = arith.index_cast %c2_i32_12 : i32 to index
    %c0_15 = arith.constant 0 : index
    %46 = vector.load %arg2[%45, %c0_15] : memref<16x128xf32, #tpu.memory_space<vmem>>, vector<1x128xf32>
    %47 = vector.broadcast %46 : vector<1x128xf32> to vector<8x128xf32>
    %48 = arith.mulf %42, %47 : vector<8x128xf32>
    %49 = arith.index_cast %c2_i32_12 : i32 to index
    %c0_16 = arith.constant 0 : index
    %50 = vector.load %arg3[%49, %c0_16] : memref<16x128xf32, #tpu.memory_space<vmem>>, vector<1x128xf32>
    %51 = vector.broadcast %50 : vector<1x128xf32> to vector<8x128xf32>
    %52 = arith.mulf %43, %51 : vector<8x128xf32>
    %53 = arith.addf %48, %52 : vector<8x128xf32>
    %54 = arith.index_cast %c2_i32_12 : i32 to index
    %c0_17 = arith.constant 0 : index
    %55 = vector.load %arg4[%54, %c0_17] : memref<16x128xf32, #tpu.memory_space<vmem>>, vector<1x128xf32>
    %56 = vector.broadcast %55 : vector<1x128xf32> to vector<8x128xf32>
    %57 = arith.mulf %44, %56 : vector<8x128xf32>
    %58 = arith.addf %53, %57 : vector<8x128xf32>
    %59 = arith.index_cast %c2_i32_12 : i32 to index
    %c0_18 = arith.constant 0 : index
    %60 = vector.load %arg5[%59, %c0_18] : memref<16x128xf32, #tpu.memory_space<vmem>>, vector<1x128xf32>
    %61 = vector.broadcast %60 : vector<1x128xf32> to vector<8x128xf32>
    %62 = arith.addf %58, %61 : vector<8x128xf32>
    %63 = math.sin %62 : vector<8x128xf32>
    %c3_i32 = arith.constant 3 : i32
    %c1_i32_19 = arith.constant 1 : i32
    %64 = tpu.dynamic_rotate %63 by %c1_i32_19 dim 1 : vector<8x128xf32>, i32 -> vector<8x128xf32>
    %c2_i32_20 = arith.constant 2 : i32
    %65 = tpu.dynamic_rotate %63 by %c2_i32_20 dim 1 : vector<8x128xf32>, i32 -> vector<8x128xf32>
    %66 = arith.index_cast %c3_i32 : i32 to index
    %c0_21 = arith.constant 0 : index
    %67 = vector.load %arg2[%66, %c0_21] : memref<16x128xf32, #tpu.memory_space<vmem>>, vector<1x128xf32>
    %68 = vector.broadcast %67 : vector<1x128xf32> to vector<8x128xf32>
    %69 = arith.mulf %63, %68 : vector<8x128xf32>
    %70 = arith.index_cast %c3_i32 : i32 to index
    %c0_22 = arith.constant 0 : index
    %71 = vector.load %arg3[%70, %c0_22] : memref<16x128xf32, #tpu.memory_space<vmem>>, vector<1x128xf32>
    %72 = vector.broadcast %71 : vector<1x128xf32> to vector<8x128xf32>
    %73 = arith.mulf %64, %72 : vector<8x128xf32>
    %74 = arith.addf %69, %73 : vector<8x128xf32>
    %75 = arith.index_cast %c3_i32 : i32 to index
    %c0_23 = arith.constant 0 : index
    %76 = vector.load %arg4[%75, %c0_23] : memref<16x128xf32, #tpu.memory_space<vmem>>, vector<1x128xf32>
    %77 = vector.broadcast %76 : vector<1x128xf32> to vector<8x128xf32>
    %78 = arith.mulf %65, %77 : vector<8x128xf32>
    %79 = arith.addf %74, %78 : vector<8x128xf32>
    %80 = arith.index_cast %c3_i32 : i32 to index
    %c0_24 = arith.constant 0 : index
    %81 = vector.load %arg5[%80, %c0_24] : memref<16x128xf32, #tpu.memory_space<vmem>>, vector<1x128xf32>
    %82 = vector.broadcast %81 : vector<1x128xf32> to vector<8x128xf32>
    %83 = arith.addf %79, %82 : vector<8x128xf32>
    %84 = math.sin %83 : vector<8x128xf32>
    %c4_i32 = arith.constant 4 : i32
    %c1_i32_25 = arith.constant 1 : i32
    %85 = tpu.dynamic_rotate %84 by %c1_i32_25 dim 1 : vector<8x128xf32>, i32 -> vector<8x128xf32>
    %c2_i32_26 = arith.constant 2 : i32
    %86 = tpu.dynamic_rotate %84 by %c2_i32_26 dim 1 : vector<8x128xf32>, i32 -> vector<8x128xf32>
    %87 = arith.index_cast %c4_i32 : i32 to index
    %c0_27 = arith.constant 0 : index
    %88 = vector.load %arg2[%87, %c0_27] : memref<16x128xf32, #tpu.memory_space<vmem>>, vector<1x128xf32>
    %89 = vector.broadcast %88 : vector<1x128xf32> to vector<8x128xf32>
    %90 = arith.mulf %84, %89 : vector<8x128xf32>
    %91 = arith.index_cast %c4_i32 : i32 to index
    %c0_28 = arith.constant 0 : index
    %92 = vector.load %arg3[%91, %c0_28] : memref<16x128xf32, #tpu.memory_space<vmem>>, vector<1x128xf32>
    %93 = vector.broadcast %92 : vector<1x128xf32> to vector<8x128xf32>
    %94 = arith.mulf %85, %93 : vector<8x128xf32>
    %95 = arith.addf %90, %94 : vector<8x128xf32>
    %96 = arith.index_cast %c4_i32 : i32 to index
    %c0_29 = arith.constant 0 : index
    %97 = vector.load %arg4[%96, %c0_29] : memref<16x128xf32, #tpu.memory_space<vmem>>, vector<1x128xf32>
    %98 = vector.broadcast %97 : vector<1x128xf32> to vector<8x128xf32>
    %99 = arith.mulf %86, %98 : vector<8x128xf32>
    %100 = arith.addf %95, %99 : vector<8x128xf32>
    %101 = arith.index_cast %c4_i32 : i32 to index
    %c0_30 = arith.constant 0 : index
    %102 = vector.load %arg5[%101, %c0_30] : memref<16x128xf32, #tpu.memory_space<vmem>>, vector<1x128xf32>
    %103 = vector.broadcast %102 : vector<1x128xf32> to vector<8x128xf32>
    %104 = arith.addf %100, %103 : vector<8x128xf32>
    %105 = math.sin %104 : vector<8x128xf32>
    %c5_i32 = arith.constant 5 : i32
    %c1_i32_31 = arith.constant 1 : i32
    %106 = tpu.dynamic_rotate %105 by %c1_i32_31 dim 1 : vector<8x128xf32>, i32 -> vector<8x128xf32>
    %c2_i32_32 = arith.constant 2 : i32
    %107 = tpu.dynamic_rotate %105 by %c2_i32_32 dim 1 : vector<8x128xf32>, i32 -> vector<8x128xf32>
    %108 = arith.index_cast %c5_i32 : i32 to index
    %c0_33 = arith.constant 0 : index
    %109 = vector.load %arg2[%108, %c0_33] : memref<16x128xf32, #tpu.memory_space<vmem>>, vector<1x128xf32>
    %110 = vector.broadcast %109 : vector<1x128xf32> to vector<8x128xf32>
    %111 = arith.mulf %105, %110 : vector<8x128xf32>
    %112 = arith.index_cast %c5_i32 : i32 to index
    %c0_34 = arith.constant 0 : index
    %113 = vector.load %arg3[%112, %c0_34] : memref<16x128xf32, #tpu.memory_space<vmem>>, vector<1x128xf32>
    %114 = vector.broadcast %113 : vector<1x128xf32> to vector<8x128xf32>
    %115 = arith.mulf %106, %114 : vector<8x128xf32>
    %116 = arith.addf %111, %115 : vector<8x128xf32>
    %117 = arith.index_cast %c5_i32 : i32 to index
    %c0_35 = arith.constant 0 : index
    %118 = vector.load %arg4[%117, %c0_35] : memref<16x128xf32, #tpu.memory_space<vmem>>, vector<1x128xf32>
    %119 = vector.broadcast %118 : vector<1x128xf32> to vector<8x128xf32>
    %120 = arith.mulf %107, %119 : vector<8x128xf32>
    %121 = arith.addf %116, %120 : vector<8x128xf32>
    %122 = arith.index_cast %c5_i32 : i32 to index
    %c0_36 = arith.constant 0 : index
    %123 = vector.load %arg5[%122, %c0_36] : memref<16x128xf32, #tpu.memory_space<vmem>>, vector<1x128xf32>
    %124 = vector.broadcast %123 : vector<1x128xf32> to vector<8x128xf32>
    %125 = arith.addf %121, %124 : vector<8x128xf32>
    %126 = math.sin %125 : vector<8x128xf32>
    %c6_i32 = arith.constant 6 : i32
    %c1_i32_37 = arith.constant 1 : i32
    %127 = tpu.dynamic_rotate %126 by %c1_i32_37 dim 1 : vector<8x128xf32>, i32 -> vector<8x128xf32>
    %c2_i32_38 = arith.constant 2 : i32
    %128 = tpu.dynamic_rotate %126 by %c2_i32_38 dim 1 : vector<8x128xf32>, i32 -> vector<8x128xf32>
    %129 = arith.index_cast %c6_i32 : i32 to index
    %c0_39 = arith.constant 0 : index
    %130 = vector.load %arg2[%129, %c0_39] : memref<16x128xf32, #tpu.memory_space<vmem>>, vector<1x128xf32>
    %131 = vector.broadcast %130 : vector<1x128xf32> to vector<8x128xf32>
    %132 = arith.mulf %126, %131 : vector<8x128xf32>
    %133 = arith.index_cast %c6_i32 : i32 to index
    %c0_40 = arith.constant 0 : index
    %134 = vector.load %arg3[%133, %c0_40] : memref<16x128xf32, #tpu.memory_space<vmem>>, vector<1x128xf32>
    %135 = vector.broadcast %134 : vector<1x128xf32> to vector<8x128xf32>
    %136 = arith.mulf %127, %135 : vector<8x128xf32>
    %137 = arith.addf %132, %136 : vector<8x128xf32>
    %138 = arith.index_cast %c6_i32 : i32 to index
    %c0_41 = arith.constant 0 : index
    %139 = vector.load %arg4[%138, %c0_41] : memref<16x128xf32, #tpu.memory_space<vmem>>, vector<1x128xf32>
    %140 = vector.broadcast %139 : vector<1x128xf32> to vector<8x128xf32>
    %141 = arith.mulf %128, %140 : vector<8x128xf32>
    %142 = arith.addf %137, %141 : vector<8x128xf32>
    %143 = arith.index_cast %c6_i32 : i32 to index
    %c0_42 = arith.constant 0 : index
    %144 = vector.load %arg5[%143, %c0_42] : memref<16x128xf32, #tpu.memory_space<vmem>>, vector<1x128xf32>
    %145 = vector.broadcast %144 : vector<1x128xf32> to vector<8x128xf32>
    %146 = arith.addf %142, %145 : vector<8x128xf32>
    %147 = math.sin %146 : vector<8x128xf32>
    %c7_i32 = arith.constant 7 : i32
    %c1_i32_43 = arith.constant 1 : i32
    %148 = tpu.dynamic_rotate %147 by %c1_i32_43 dim 1 : vector<8x128xf32>, i32 -> vector<8x128xf32>
    %c2_i32_44 = arith.constant 2 : i32
    %149 = tpu.dynamic_rotate %147 by %c2_i32_44 dim 1 : vector<8x128xf32>, i32 -> vector<8x128xf32>
    %150 = arith.index_cast %c7_i32 : i32 to index
    %c0_45 = arith.constant 0 : index
    %151 = vector.load %arg2[%150, %c0_45] : memref<16x128xf32, #tpu.memory_space<vmem>>, vector<1x128xf32>
    %152 = vector.broadcast %151 : vector<1x128xf32> to vector<8x128xf32>
    %153 = arith.mulf %147, %152 : vector<8x128xf32>
    %154 = arith.index_cast %c7_i32 : i32 to index
    %c0_46 = arith.constant 0 : index
    %155 = vector.load %arg3[%154, %c0_46] : memref<16x128xf32, #tpu.memory_space<vmem>>, vector<1x128xf32>
    %156 = vector.broadcast %155 : vector<1x128xf32> to vector<8x128xf32>
    %157 = arith.mulf %148, %156 : vector<8x128xf32>
    %158 = arith.addf %153, %157 : vector<8x128xf32>
    %159 = arith.index_cast %c7_i32 : i32 to index
    %c0_47 = arith.constant 0 : index
    %160 = vector.load %arg4[%159, %c0_47] : memref<16x128xf32, #tpu.memory_space<vmem>>, vector<1x128xf32>
    %161 = vector.broadcast %160 : vector<1x128xf32> to vector<8x128xf32>
    %162 = arith.mulf %149, %161 : vector<8x128xf32>
    %163 = arith.addf %158, %162 : vector<8x128xf32>
    %164 = arith.index_cast %c7_i32 : i32 to index
    %c0_48 = arith.constant 0 : index
    %165 = vector.load %arg5[%164, %c0_48] : memref<16x128xf32, #tpu.memory_space<vmem>>, vector<1x128xf32>
    %166 = vector.broadcast %165 : vector<1x128xf32> to vector<8x128xf32>
    %167 = arith.addf %163, %166 : vector<8x128xf32>
    %168 = math.sin %167 : vector<8x128xf32>
    %c8_i32 = arith.constant 8 : i32
    %c1_i32_49 = arith.constant 1 : i32
    %169 = tpu.dynamic_rotate %168 by %c1_i32_49 dim 1 : vector<8x128xf32>, i32 -> vector<8x128xf32>
    %c2_i32_50 = arith.constant 2 : i32
    %170 = tpu.dynamic_rotate %168 by %c2_i32_50 dim 1 : vector<8x128xf32>, i32 -> vector<8x128xf32>
    %171 = arith.index_cast %c8_i32 : i32 to index
    %c0_51 = arith.constant 0 : index
    %172 = vector.load %arg2[%171, %c0_51] : memref<16x128xf32, #tpu.memory_space<vmem>>, vector<1x128xf32>
    %173 = vector.broadcast %172 : vector<1x128xf32> to vector<8x128xf32>
    %174 = arith.mulf %168, %173 : vector<8x128xf32>
    %175 = arith.index_cast %c8_i32 : i32 to index
    %c0_52 = arith.constant 0 : index
    %176 = vector.load %arg3[%175, %c0_52] : memref<16x128xf32, #tpu.memory_space<vmem>>, vector<1x128xf32>
    %177 = vector.broadcast %176 : vector<1x128xf32> to vector<8x128xf32>
    %178 = arith.mulf %169, %177 : vector<8x128xf32>
    %179 = arith.addf %174, %178 : vector<8x128xf32>
    %180 = arith.index_cast %c8_i32 : i32 to index
    %c0_53 = arith.constant 0 : index
    %181 = vector.load %arg4[%180, %c0_53] : memref<16x128xf32, #tpu.memory_space<vmem>>, vector<1x128xf32>
    %182 = vector.broadcast %181 : vector<1x128xf32> to vector<8x128xf32>
    %183 = arith.mulf %170, %182 : vector<8x128xf32>
    %184 = arith.addf %179, %183 : vector<8x128xf32>
    %185 = arith.index_cast %c8_i32 : i32 to index
    %c0_54 = arith.constant 0 : index
    %186 = vector.load %arg5[%185, %c0_54] : memref<16x128xf32, #tpu.memory_space<vmem>>, vector<1x128xf32>
    %187 = vector.broadcast %186 : vector<1x128xf32> to vector<8x128xf32>
    %188 = arith.addf %184, %187 : vector<8x128xf32>
    %189 = math.sin %188 : vector<8x128xf32>
    %c9_i32 = arith.constant 9 : i32
    %c1_i32_55 = arith.constant 1 : i32
    %190 = tpu.dynamic_rotate %189 by %c1_i32_55 dim 1 : vector<8x128xf32>, i32 -> vector<8x128xf32>
    %c2_i32_56 = arith.constant 2 : i32
    %191 = tpu.dynamic_rotate %189 by %c2_i32_56 dim 1 : vector<8x128xf32>, i32 -> vector<8x128xf32>
    %192 = arith.index_cast %c9_i32 : i32 to index
    %c0_57 = arith.constant 0 : index
    %193 = vector.load %arg2[%192, %c0_57] : memref<16x128xf32, #tpu.memory_space<vmem>>, vector<1x128xf32>
    %194 = vector.broadcast %193 : vector<1x128xf32> to vector<8x128xf32>
    %195 = arith.mulf %189, %194 : vector<8x128xf32>
    %196 = arith.index_cast %c9_i32 : i32 to index
    %c0_58 = arith.constant 0 : index
    %197 = vector.load %arg3[%196, %c0_58] : memref<16x128xf32, #tpu.memory_space<vmem>>, vector<1x128xf32>
    %198 = vector.broadcast %197 : vector<1x128xf32> to vector<8x128xf32>
    %199 = arith.mulf %190, %198 : vector<8x128xf32>
    %200 = arith.addf %195, %199 : vector<8x128xf32>
    %201 = arith.index_cast %c9_i32 : i32 to index
    %c0_59 = arith.constant 0 : index
    %202 = vector.load %arg4[%201, %c0_59] : memref<16x128xf32, #tpu.memory_space<vmem>>, vector<1x128xf32>
    %203 = vector.broadcast %202 : vector<1x128xf32> to vector<8x128xf32>
    %204 = arith.mulf %191, %203 : vector<8x128xf32>
    %205 = arith.addf %200, %204 : vector<8x128xf32>
    %206 = arith.index_cast %c9_i32 : i32 to index
    %c0_60 = arith.constant 0 : index
    %207 = vector.load %arg5[%206, %c0_60] : memref<16x128xf32, #tpu.memory_space<vmem>>, vector<1x128xf32>
    %208 = vector.broadcast %207 : vector<1x128xf32> to vector<8x128xf32>
    %209 = arith.addf %205, %208 : vector<8x128xf32>
    %210 = math.sin %209 : vector<8x128xf32>
    %c10_i32 = arith.constant 10 : i32
    %c1_i32_61 = arith.constant 1 : i32
    %211 = tpu.dynamic_rotate %210 by %c1_i32_61 dim 1 : vector<8x128xf32>, i32 -> vector<8x128xf32>
    %c2_i32_62 = arith.constant 2 : i32
    %212 = tpu.dynamic_rotate %210 by %c2_i32_62 dim 1 : vector<8x128xf32>, i32 -> vector<8x128xf32>
    %213 = arith.index_cast %c10_i32 : i32 to index
    %c0_63 = arith.constant 0 : index
    %214 = vector.load %arg2[%213, %c0_63] : memref<16x128xf32, #tpu.memory_space<vmem>>, vector<1x128xf32>
    %215 = vector.broadcast %214 : vector<1x128xf32> to vector<8x128xf32>
    %216 = arith.mulf %210, %215 : vector<8x128xf32>
    %217 = arith.index_cast %c10_i32 : i32 to index
    %c0_64 = arith.constant 0 : index
    %218 = vector.load %arg3[%217, %c0_64] : memref<16x128xf32, #tpu.memory_space<vmem>>, vector<1x128xf32>
    %219 = vector.broadcast %218 : vector<1x128xf32> to vector<8x128xf32>
    %220 = arith.mulf %211, %219 : vector<8x128xf32>
    %221 = arith.addf %216, %220 : vector<8x128xf32>
    %222 = arith.index_cast %c10_i32 : i32 to index
    %c0_65 = arith.constant 0 : index
    %223 = vector.load %arg4[%222, %c0_65] : memref<16x128xf32, #tpu.memory_space<vmem>>, vector<1x128xf32>
    %224 = vector.broadcast %223 : vector<1x128xf32> to vector<8x128xf32>
    %225 = arith.mulf %212, %224 : vector<8x128xf32>
    %226 = arith.addf %221, %225 : vector<8x128xf32>
    %227 = arith.index_cast %c10_i32 : i32 to index
    %c0_66 = arith.constant 0 : index
    %228 = vector.load %arg5[%227, %c0_66] : memref<16x128xf32, #tpu.memory_space<vmem>>, vector<1x128xf32>
    %229 = vector.broadcast %228 : vector<1x128xf32> to vector<8x128xf32>
    %230 = arith.addf %226, %229 : vector<8x128xf32>
    %231 = math.sin %230 : vector<8x128xf32>
    %c11_i32 = arith.constant 11 : i32
    %c1_i32_67 = arith.constant 1 : i32
    %232 = tpu.dynamic_rotate %231 by %c1_i32_67 dim 1 : vector<8x128xf32>, i32 -> vector<8x128xf32>
    %c2_i32_68 = arith.constant 2 : i32
    %233 = tpu.dynamic_rotate %231 by %c2_i32_68 dim 1 : vector<8x128xf32>, i32 -> vector<8x128xf32>
    %234 = arith.index_cast %c11_i32 : i32 to index
    %c0_69 = arith.constant 0 : index
    %235 = vector.load %arg2[%234, %c0_69] : memref<16x128xf32, #tpu.memory_space<vmem>>, vector<1x128xf32>
    %236 = vector.broadcast %235 : vector<1x128xf32> to vector<8x128xf32>
    %237 = arith.mulf %231, %236 : vector<8x128xf32>
    %238 = arith.index_cast %c11_i32 : i32 to index
    %c0_70 = arith.constant 0 : index
    %239 = vector.load %arg3[%238, %c0_70] : memref<16x128xf32, #tpu.memory_space<vmem>>, vector<1x128xf32>
    %240 = vector.broadcast %239 : vector<1x128xf32> to vector<8x128xf32>
    %241 = arith.mulf %232, %240 : vector<8x128xf32>
    %242 = arith.addf %237, %241 : vector<8x128xf32>
    %243 = arith.index_cast %c11_i32 : i32 to index
    %c0_71 = arith.constant 0 : index
    %244 = vector.load %arg4[%243, %c0_71] : memref<16x128xf32, #tpu.memory_space<vmem>>, vector<1x128xf32>
    %245 = vector.broadcast %244 : vector<1x128xf32> to vector<8x128xf32>
    %246 = arith.mulf %233, %245 : vector<8x128xf32>
    %247 = arith.addf %242, %246 : vector<8x128xf32>
    %248 = arith.index_cast %c11_i32 : i32 to index
    %c0_72 = arith.constant 0 : index
    %249 = vector.load %arg5[%248, %c0_72] : memref<16x128xf32, #tpu.memory_space<vmem>>, vector<1x128xf32>
    %250 = vector.broadcast %249 : vector<1x128xf32> to vector<8x128xf32>
    %251 = arith.addf %247, %250 : vector<8x128xf32>
    %252 = math.sin %251 : vector<8x128xf32>
    %c12_i32 = arith.constant 12 : i32
    %c1_i32_73 = arith.constant 1 : i32
    %253 = tpu.dynamic_rotate %252 by %c1_i32_73 dim 1 : vector<8x128xf32>, i32 -> vector<8x128xf32>
    %c2_i32_74 = arith.constant 2 : i32
    %254 = tpu.dynamic_rotate %252 by %c2_i32_74 dim 1 : vector<8x128xf32>, i32 -> vector<8x128xf32>
    %255 = arith.index_cast %c12_i32 : i32 to index
    %c0_75 = arith.constant 0 : index
    %256 = vector.load %arg2[%255, %c0_75] : memref<16x128xf32, #tpu.memory_space<vmem>>, vector<1x128xf32>
    %257 = vector.broadcast %256 : vector<1x128xf32> to vector<8x128xf32>
    %258 = arith.mulf %252, %257 : vector<8x128xf32>
    %259 = arith.index_cast %c12_i32 : i32 to index
    %c0_76 = arith.constant 0 : index
    %260 = vector.load %arg3[%259, %c0_76] : memref<16x128xf32, #tpu.memory_space<vmem>>, vector<1x128xf32>
    %261 = vector.broadcast %260 : vector<1x128xf32> to vector<8x128xf32>
    %262 = arith.mulf %253, %261 : vector<8x128xf32>
    %263 = arith.addf %258, %262 : vector<8x128xf32>
    %264 = arith.index_cast %c12_i32 : i32 to index
    %c0_77 = arith.constant 0 : index
    %265 = vector.load %arg4[%264, %c0_77] : memref<16x128xf32, #tpu.memory_space<vmem>>, vector<1x128xf32>
    %266 = vector.broadcast %265 : vector<1x128xf32> to vector<8x128xf32>
    %267 = arith.mulf %254, %266 : vector<8x128xf32>
    %268 = arith.addf %263, %267 : vector<8x128xf32>
    %269 = arith.index_cast %c12_i32 : i32 to index
    %c0_78 = arith.constant 0 : index
    %270 = vector.load %arg5[%269, %c0_78] : memref<16x128xf32, #tpu.memory_space<vmem>>, vector<1x128xf32>
    %271 = vector.broadcast %270 : vector<1x128xf32> to vector<8x128xf32>
    %272 = arith.addf %268, %271 : vector<8x128xf32>
    %273 = math.sin %272 : vector<8x128xf32>
    %c13_i32 = arith.constant 13 : i32
    %c1_i32_79 = arith.constant 1 : i32
    %274 = tpu.dynamic_rotate %273 by %c1_i32_79 dim 1 : vector<8x128xf32>, i32 -> vector<8x128xf32>
    %c2_i32_80 = arith.constant 2 : i32
    %275 = tpu.dynamic_rotate %273 by %c2_i32_80 dim 1 : vector<8x128xf32>, i32 -> vector<8x128xf32>
    %276 = arith.index_cast %c13_i32 : i32 to index
    %c0_81 = arith.constant 0 : index
    %277 = vector.load %arg2[%276, %c0_81] : memref<16x128xf32, #tpu.memory_space<vmem>>, vector<1x128xf32>
    %278 = vector.broadcast %277 : vector<1x128xf32> to vector<8x128xf32>
    %279 = arith.mulf %273, %278 : vector<8x128xf32>
    %280 = arith.index_cast %c13_i32 : i32 to index
    %c0_82 = arith.constant 0 : index
    %281 = vector.load %arg3[%280, %c0_82] : memref<16x128xf32, #tpu.memory_space<vmem>>, vector<1x128xf32>
    %282 = vector.broadcast %281 : vector<1x128xf32> to vector<8x128xf32>
    %283 = arith.mulf %274, %282 : vector<8x128xf32>
    %284 = arith.addf %279, %283 : vector<8x128xf32>
    %285 = arith.index_cast %c13_i32 : i32 to index
    %c0_83 = arith.constant 0 : index
    %286 = vector.load %arg4[%285, %c0_83] : memref<16x128xf32, #tpu.memory_space<vmem>>, vector<1x128xf32>
    %287 = vector.broadcast %286 : vector<1x128xf32> to vector<8x128xf32>
    %288 = arith.mulf %275, %287 : vector<8x128xf32>
    %289 = arith.addf %284, %288 : vector<8x128xf32>
    %290 = arith.index_cast %c13_i32 : i32 to index
    %c0_84 = arith.constant 0 : index
    %291 = vector.load %arg5[%290, %c0_84] : memref<16x128xf32, #tpu.memory_space<vmem>>, vector<1x128xf32>
    %292 = vector.broadcast %291 : vector<1x128xf32> to vector<8x128xf32>
    %293 = arith.addf %289, %292 : vector<8x128xf32>
    %294 = math.sin %293 : vector<8x128xf32>
    %c14_i32 = arith.constant 14 : i32
    %c1_i32_85 = arith.constant 1 : i32
    %295 = tpu.dynamic_rotate %294 by %c1_i32_85 dim 1 : vector<8x128xf32>, i32 -> vector<8x128xf32>
    %c2_i32_86 = arith.constant 2 : i32
    %296 = tpu.dynamic_rotate %294 by %c2_i32_86 dim 1 : vector<8x128xf32>, i32 -> vector<8x128xf32>
    %297 = arith.index_cast %c14_i32 : i32 to index
    %c0_87 = arith.constant 0 : index
    %298 = vector.load %arg2[%297, %c0_87] : memref<16x128xf32, #tpu.memory_space<vmem>>, vector<1x128xf32>
    %299 = vector.broadcast %298 : vector<1x128xf32> to vector<8x128xf32>
    %300 = arith.mulf %294, %299 : vector<8x128xf32>
    %301 = arith.index_cast %c14_i32 : i32 to index
    %c0_88 = arith.constant 0 : index
    %302 = vector.load %arg3[%301, %c0_88] : memref<16x128xf32, #tpu.memory_space<vmem>>, vector<1x128xf32>
    %303 = vector.broadcast %302 : vector<1x128xf32> to vector<8x128xf32>
    %304 = arith.mulf %295, %303 : vector<8x128xf32>
    %305 = arith.addf %300, %304 : vector<8x128xf32>
    %306 = arith.index_cast %c14_i32 : i32 to index
    %c0_89 = arith.constant 0 : index
    %307 = vector.load %arg4[%306, %c0_89] : memref<16x128xf32, #tpu.memory_space<vmem>>, vector<1x128xf32>
    %308 = vector.broadcast %307 : vector<1x128xf32> to vector<8x128xf32>
    %309 = arith.mulf %296, %308 : vector<8x128xf32>
    %310 = arith.addf %305, %309 : vector<8x128xf32>
    %311 = arith.index_cast %c14_i32 : i32 to index
    %c0_90 = arith.constant 0 : index
    %312 = vector.load %arg5[%311, %c0_90] : memref<16x128xf32, #tpu.memory_space<vmem>>, vector<1x128xf32>
    %313 = vector.broadcast %312 : vector<1x128xf32> to vector<8x128xf32>
    %314 = arith.addf %310, %313 : vector<8x128xf32>
    %315 = math.sin %314 : vector<8x128xf32>
    %c15_i32 = arith.constant 15 : i32
    %c1_i32_91 = arith.constant 1 : i32
    %316 = tpu.dynamic_rotate %315 by %c1_i32_91 dim 1 : vector<8x128xf32>, i32 -> vector<8x128xf32>
    %c2_i32_92 = arith.constant 2 : i32
    %317 = tpu.dynamic_rotate %315 by %c2_i32_92 dim 1 : vector<8x128xf32>, i32 -> vector<8x128xf32>
    %318 = arith.index_cast %c15_i32 : i32 to index
    %c0_93 = arith.constant 0 : index
    %319 = vector.load %arg2[%318, %c0_93] : memref<16x128xf32, #tpu.memory_space<vmem>>, vector<1x128xf32>
    %320 = vector.broadcast %319 : vector<1x128xf32> to vector<8x128xf32>
    %321 = arith.mulf %315, %320 : vector<8x128xf32>
    %322 = arith.index_cast %c15_i32 : i32 to index
    %c0_94 = arith.constant 0 : index
    %323 = vector.load %arg3[%322, %c0_94] : memref<16x128xf32, #tpu.memory_space<vmem>>, vector<1x128xf32>
    %324 = vector.broadcast %323 : vector<1x128xf32> to vector<8x128xf32>
    %325 = arith.mulf %316, %324 : vector<8x128xf32>
    %326 = arith.addf %321, %325 : vector<8x128xf32>
    %327 = arith.index_cast %c15_i32 : i32 to index
    %c0_95 = arith.constant 0 : index
    %328 = vector.load %arg4[%327, %c0_95] : memref<16x128xf32, #tpu.memory_space<vmem>>, vector<1x128xf32>
    %329 = vector.broadcast %328 : vector<1x128xf32> to vector<8x128xf32>
    %330 = arith.mulf %317, %329 : vector<8x128xf32>
    %331 = arith.addf %326, %330 : vector<8x128xf32>
    %332 = arith.index_cast %c15_i32 : i32 to index
    %c0_96 = arith.constant 0 : index
    %333 = vector.load %arg5[%332, %c0_96] : memref<16x128xf32, #tpu.memory_space<vmem>>, vector<1x128xf32>
    %334 = vector.broadcast %333 : vector<1x128xf32> to vector<8x128xf32>
    %335 = arith.addf %331, %334 : vector<8x128xf32>
    %336 = math.sin %335 : vector<8x128xf32>
    %c16_i32 = arith.constant 16 : i32
    %c0_97 = arith.constant 0 : index
    %c0_98 = arith.constant 0 : index
    %337 = vector.load %arg6[%c0_97, %c0_98] : memref<8x128xf32, #tpu.memory_space<vmem>>, vector<8x128xf32>
    tpu.vector_store %arg6[%c0_97, %c0_98], %336 {strides = array<i32>} : memref<8x128xf32, #tpu.memory_space<vmem>>, vector<8x128xf32>,
    return
  }
  func.func @transform_0(%arg0: i32) -> (i32, i32) {
    %c0_i32 = arith.constant 0 : i32
    %c0_i32_0 = arith.constant 0 : i32
    return %arg0, %c0_i32 : i32, i32
  }
  func.func @transform_1(%arg0: i32) -> (i32, i32) {
    %c0_i32 = arith.constant 0 : i32
    %c0_i32_0 = arith.constant 0 : i32
    %c0_i32_1 = arith.constant 0 : i32
    return %c0_i32, %c0_i32_0 : i32, i32
  }
  func.func @transform_2(%arg0: i32) -> (i32, i32) {
    %c0_i32 = arith.constant 0 : i32
    %c0_i32_0 = arith.constant 0 : i32
    %c0_i32_1 = arith.constant 0 : i32
    return %c0_i32, %c0_i32_0 : i32, i32
  }
  func.func @transform_3(%arg0: i32) -> (i32, i32) {
    %c0_i32 = arith.constant 0 : i32
    %c0_i32_0 = arith.constant 0 : i32
    %c0_i32_1 = arith.constant 0 : i32
    return %c0_i32, %c0_i32_0 : i32, i32
  }
  func.func @transform_4(%arg0: i32) -> (i32, i32) {
    %c0_i32 = arith.constant 0 : i32
    %c0_i32_0 = arith.constant 0 : i32
    %c0_i32_1 = arith.constant 0 : i32
    return %c0_i32, %c0_i32_0 : i32, i32
  }
  func.func @transform_5(%arg0: i32) -> (i32, i32) {
    %c0_i32 = arith.constant 0 : i32
    %c0_i32_0 = arith.constant 0 : i32
    return %arg0, %c0_i32 : i32, i32
  }
}

</mosaic_0001>

<llo_original>
// kernel: tpu_custom_call.1
$region0: #{tpu_custom_call.1}
  #allocation0 [shape = 'u32[]', space=smem, size = 0x4, offset = 0x4, fixed_abs, tag = 'smem constant byte address 0x4 - core index']
  #allocation1 [shape = 'u32[144,128]{1,0:T(1,128)}', space=vmem, size = 0x12000, scoped, tag = 'internal scratch']
  %s0 = inlined_call_operand.hbm [shape: f32[8,128], index: 0, kind: input, shape index: {}]
  %s1 = inlined_call_operand.hbm [shape: f32[16,128], index: 1, kind: input, shape index: {}]
  %s2 = inlined_call_operand.hbm [shape: f32[16,128], index: 2, kind: input, shape index: {}]
  %s3 = inlined_call_operand.hbm [shape: f32[16,128], index: 3, kind: input, shape index: {}]
  %s4 = inlined_call_operand.hbm [shape: f32[16,128], index: 4, kind: input, shape index: {}]
  %s5 = inlined_call_operand.hbm [shape: f32[8,128], index: 5, kind: output, shape index: {}]
  %s6 = sld [smem:[#allocation0]]
  $region50: #{tpu_custom_call.1} parent=0
    _
  %s8 = ssub.s32 1, %s6
  %s9 = scalar_select 0, %s8, %s6
  $region1: #{tpu_custom_call.1} parent=0
    #allocation2 [shape = 'u8[4096]{0}', space=vmem, size = 0x1000, scoped, tag = 'input window, operand 0, single buffered']
    #allocation3 [shape = 's32[1]{0}', space=sflag, size = 0x4, scoped, tag = 'scoped memory for tpu_custom_call.1']
    #allocation4 [shape = 's32[1]{0}', space=sflag, size = 0x4, scoped, tag = 'scoped memory for tpu_custom_call.1']
    #allocation5 [shape = 'u8[8192]{0}', space=vmem, size = 0x2000, scoped, tag = 'input window, operand 1, single buffered']
    #allocation6 [shape = 's32[1]{0}', space=sflag, size = 0x4, scoped, tag = 'scoped memory for tpu_custom_call.1']
    #allocation7 [shape = 'u8[8192]{0}', space=vmem, size = 0x2000, scoped, tag = 'input window, operand 2, single buffered']
    #allocation8 [shape = 'u8[8192]{0}', space=vmem, size = 0x2000, scoped, tag = 'input window, operand 3, single buffered']
    #allocation9 [shape = 's32[1]{0}', space=sflag, size = 0x4, scoped, tag = 'scoped memory for tpu_custom_call.1']
    #allocation10 [shape = 'u8[8192]{0}', space=vmem, size = 0x2000, scoped, tag = 'input window, operand 4, single buffered']
    #allocation11 [shape = 'u8[4096]{0}', space=vmem, size = 0x1000, scoped, tag = 'output window, operand 0, single buffered']
    %10 = vsyncpa [#allocation3], 0
    %11 = vsyncpa [#allocation6], 0
    %12 = vsyncpa [#allocation9], 0
    %13 = vsyncpa [#allocation4], 0
    // Predicated region
    $region2: #{tpu_custom_call.1} parent=1 // pred_check
      _
    $region3: #{tpu_custom_call.1} parent=1 // pred_check_branch
      %15 = sbr.rel (0) target = $region5
    $region4: #{tpu_custom_call.1} parent=1 // pred_region
      %s17 = ssub.s32 128, 128
      %18 = vsyncadd [#allocation3], %s17
      %s20 = sshll.u32 [#allocation2], 4
      %s21 = int_to_ptr.vmem [resolvable:$true] %s20
      %23 = dma.hbm_to_vmem [thread:$0]  %s0, 128, %s21, [#allocation3]
    $region5: #{tpu_custom_call.1} parent=1 // pred_fallthru
      _
    // Predicated region
    $region6: #{tpu_custom_call.1} parent=1 // pred_check
      _
    $region7: #{tpu_custom_call.1} parent=1 // pred_check_branch
      %25 = sbr.rel (0) target = $region9
    $region8: #{tpu_custom_call.1} parent=1 // pred_region
      %s27 = ssub.s32 256, 256
      %28 = vsyncadd [#allocation6], %s27
      %s29 = sshll.u32 [#allocation5], 4
      %s30 = int_to_ptr.vmem [resolvable:$true] %s29
      %35 = dma.hbm_to_vmem [thread:$0]  %s1, 256, %s30, [#allocation6], 128, 128, 8
    $region9: #{tpu_custom_call.1} parent=1 // pred_fallthru
      _
    // Predicated region
    $region10: #{tpu_custom_call.1} parent=1 // pred_check
      _
    $region11: #{tpu_custom_call.1} parent=1 // pred_check_branch
      %37 = sbr.rel (0) target = $region13
    $region12: #{tpu_custom_call.1} parent=1 // pred_region
      %s39 = ssub.s32 256, 256
      %40 = vsyncadd [#allocation6], %s39
      %s41 = sshll.u32 [#allocation7], 4
      %s42 = int_to_ptr.vmem [resolvable:$true] %s41
      %47 = dma.hbm_to_vmem [thread:$0]  %s2, 256, %s42, [#allocation6], 128, 128, 8
    $region13: #{tpu_custom_call.1} parent=1 // pred_fallthru
      _
    // Predicated region
    $region14: #{tpu_custom_call.1} parent=1 // pred_check
      _
    $region15: #{tpu_custom_call.1} parent=1 // pred_check_branch
      %49 = sbr.rel (0) target = $region17
    $region16: #{tpu_custom_call.1} parent=1 // pred_region
      %s51 = ssub.s32 256, 256
      %52 = vsyncadd [#allocation9], %s51
      %s53 = sshll.u32 [#allocation8], 4
      %s54 = int_to_ptr.vmem [resolvable:$true] %s53
      %59 = dma.hbm_to_vmem [thread:$0]  %s3, 256, %s54, [#allocation9], 128, 128, 8
    $region17: #{tpu_custom_call.1} parent=1 // pred_fallthru
      _
    // Predicated region
    $region18: #{tpu_custom_call.1} parent=1 // pred_check
      _
    $region19: #{tpu_custom_call.1} parent=1 // pred_check_branch
      %61 = sbr.rel (0) target = $region21
    $region20: #{tpu_custom_call.1} parent=1 // pred_region
      %s63 = ssub.s32 256, 256
      %64 = vsyncadd [#allocation9], %s63
      %s65 = sshll.u32 [#allocation10], 4
      %s66 = int_to_ptr.vmem [resolvable:$true] %s65
      %71 = dma.hbm_to_vmem [thread:$0]  %s4, 256, %s66, [#allocation9], 128, 128, 8
    $region21: #{tpu_custom_call.1} parent=1 // pred_fallthru
      _
    // Predicated region
    $region22: #{tpu_custom_call.1} parent=1 // pred_check
      _
    $region23: #{tpu_custom_call.1} parent=1 // pred_check_branch
      %73 = sbr.rel (0) target = $region25
    $region24: #{tpu_custom_call.1} parent=1 // pred_region
      %74 = dma.done [#allocation3], 128
    $region25: #{tpu_custom_call.1} parent=1 // pred_fallthru
      _
    // Predicated region
    $region26: #{tpu_custom_call.1} parent=1 // pred_check
      _
    $region27: #{tpu_custom_call.1} parent=1 // pred_check_branch
      %76 = sbr.rel (0) target = $region29
    $region28: #{tpu_custom_call.1} parent=1 // pred_region
      %77 = dma.done [#allocation6], 256
    $region29: #{tpu_custom_call.1} parent=1 // pred_fallthru
      _
    // Predicated region
    $region30: #{tpu_custom_call.1} parent=1 // pred_check
      _
    $region31: #{tpu_custom_call.1} parent=1 // pred_check_branch
      %79 = sbr.rel (0) target = $region33
    $region32: #{tpu_custom_call.1} parent=1 // pred_region
      %80 = dma.done [#allocation6], 256
    $region33: #{tpu_custom_call.1} parent=1 // pred_fallthru
      _
    // Predicated region
    $region34: #{tpu_custom_call.1} parent=1 // pred_check
      _
    $region35: #{tpu_custom_call.1} parent=1 // pred_check_branch
      %82 = sbr.rel (0) target = $region37
    $region36: #{tpu_custom_call.1} parent=1 // pred_region
      %83 = dma.done [#allocation9], 256
    $region37: #{tpu_custom_call.1} parent=1 // pred_fallthru
      _
    // Predicated region
    $region38: #{tpu_custom_call.1} parent=1 // pred_check
      _
    $region39: #{tpu_custom_call.1} parent=1 // pred_check_branch
      %85 = sbr.rel (0) target = $region41
    $region40: #{tpu_custom_call.1} parent=1 // pred_region
      %86 = dma.done [#allocation9], 256
    $region41: #{tpu_custom_call.1} parent=1 // pred_fallthru
      _
    %v87 = vld [vmem:[#allocation2] sm:$0xff]
    %88 = vrot.lane.b32.xlu0 %v87, 1
    %v89 = vpop.permute.xlu0 %88
    %90 = vrot.lane.b32.xlu0 %v87, 2
    %v91 = vpop.permute.xlu0 %90
    %v92 = vld [vmem:[#allocation5] sm:$0x1]
    %v93 = vlaneseq
    %v94 = vshrl.u32 %v93, 7
    %v95 = vsub.s32 0, %v94
    %v96 = vrot.slane %v92, %v95
    %v97 = vmul.f32 %v87, %v96
    %v98 = vld [vmem:[#allocation7] sm:$0x1]
    %v99 = vlaneseq
    %v100 = vshrl.u32 %v99, 7
    %v101 = vsub.s32 0, %v100
    %v102 = vrot.slane %v98, %v101
    %v103 = vmul.f32 %v89, %v102
    %v104 = vadd.f32 %v97, %v103
    %v105 = vld [vmem:[#allocation8] sm:$0x1]
    %v106 = vlaneseq
    %v107 = vshrl.u32 %v106, 7
    %v108 = vsub.s32 0, %v107
    %v109 = vrot.slane %v105, %v108
    %v110 = vmul.f32 %v91, %v109
    %v111 = vadd.f32 %v104, %v110
    %v112 = vld [vmem:[#allocation10] sm:$0x1]
    %v113 = vlaneseq
    %v114 = vshrl.u32 %v113, 7
    %v115 = vsub.s32 0, %v114
    %v116 = vrot.slane %v112, %v115
    %v117 = vadd.f32 %v111, %v116
    %v118 = vand.u32 2147483647, %v117
    %vm119 = vcmp.le.f32.partialorder %v118, 0.7853982
    %vm120 = vcmp.lt.s32.totalorder %v117, 0
    %v121 = vand.u32 %v117, 2139095040
    %v122 = vshrl.u32 %v121, 23
    %v123 = vsub.s32 %v122, 127
    %v124 = vand.u32 2147483647, %v117
    %v125 = vand.u32 %v124, 8388607
    %v126 = vor.u32 %v125, 8388608
    %v127 = vsub.s32 0, %v126
    %v128 = vadd.s32 %v123, 1
    %vm129 = vcmp.gt.s32.totalorder %v128, 0
    %v130 = vsel %vm129, %v128, 0
    %v131 = vshrl.u32 %v130, 5
    %v132 = vand.u32 %v130, 31
    %v133 = vsub.s32 32, %v132
    %v134 = vshrl.u32 683565275, %v133
    %v135 = vshll.u32 683565275, %v132
    %v136 = vshrl.u32 2475754826, %v133
    %v137 = vor.u32 %v135, %v136
    %v138 = vshll.u32 2475754826, %v132
    %v139 = vshrl.u32 2131351028, %v133
    %v140 = vor.u32 %v138, %v139
    %v141 = vshll.u32 2131351028, %v132
    %v142 = vshrl.u32 2102212464, %v133
    %v143 = vor.u32 %v141, %v142
    %v144 = vshll.u32 2102212464, %v132
    %v145 = vshrl.u32 920167782, %v133
    %v146 = vor.u32 %v144, %v145
    %v147 = vshll.u32 920167782, %v132
    %v148 = vshrl.u32 1326507024, %v133
    %v149 = vor.u32 %v147, %v148
    %vm150 = vcmp.lt.s32.totalorder %v131, 1
    %vm151 = vcmp.lt.s32.totalorder %v131, 2
    %vm152 = vcmp.lt.s32.totalorder %v131, 3
    %vm153 = vcmp.lt.s32.totalorder %v131, 4
    %v154 = vsel %vm150, %v134, %v137
    %v155 = vsel %vm153, %v143, 2102212464
    %v156 = vsel %vm152, %v140, %v155
    %v157 = vsel %vm151, %v154, %v156
    %v158 = vsel %vm150, %v137, %v140
    %v159 = vsel %vm153, %v146, 920167782
    %v160 = vsel %vm152, %v143, %v159
    %v161 = vsel %vm151, %v158, %v160
    %v162 = vsel %vm150, %v140, %v143
    %v163 = vsel %vm153, %v149, 1326507024
    %v164 = vsel %vm152, %v146, %v163
    %v165 = vsel %vm151, %v162, %v164
    %v166 = vshll.u32 %v126, 8
    %v167 = vmul.u32.u64.compose %v166, %v165
    %v168 = vextract.low.u32 %v167
    %v169 = vextract.high.u32 %v167
    %v170 = vmul.u32.u64.compose %v166, %v161
    %v171 = vextract.low.u32 %v170
    %v172 = vextract.high.u32 %v170
    %v173 = vmul.u32 %v166, %v157
    %v174 = vadd.s32 %v169, %v171
    %vm175 = vc.u32 %v169, %v171
    %v176 = vadd.s32 %v172, 1
    %v177 = vsel %vm175, %v176, %v172
    %v178 = vadd.s32 %v173, %v177
    %v179 = vadd.s32 %v178, 536870912
    %v180 = vshrl.u32 %v179, 30
    %v181 = vshll.u32 %v180, 30
    %v182 = vsub.s32 %v178, %v181
    %vm183 = vcmp.lt.s32.totalorder %v182, 0
    %v184 = vsub.s32 0, %v182
    %v185 = vsel %vm183, %v184, %v182
    %v186 = vclz %v185
    %v187 = vsub.s32 %v186, 2
    %vm188 = vcmp.gt.s32.totalorder 0, %v187
    %v189 = vsel %vm188, 0, %v187
    %v190 = vsub.s32 32, %v189
    %v191 = vshll.u32 %v182, %v189
    %v192 = vshrl.u32 %v174, %v190
    %v193 = vor.u32 %v191, %v192
    %v194 = vsub.s32 4294967266, %v189
    %v195 = vadd.s32 %v194, 127
    %v196 = vshll.u32 %v195, 23
    %v197 = vor.u32 4788187, %v196
    %v198 = vand.u32 2147483647, %v197
    %v200 = vcvt.s32.f32 %v193
    %v201 = vmul.f32 %v200, %v198
    %v202 = vxor.u32 %v201, 2147483648
    %v203 = vsel %vm120, %v202, %v201
    %v204 = vsub.s32 4, %v180
    %v205 = vsel %vm120, %v204, %v180
    %v206 = vsel %vm119, %v117, %v203
    %v207 = vsel %vm119, 0, %v205
    %v208 = vcosq.f32.pop %v206
    %v209 = vsinq.f32.pop %v206
    %vm210 = vweird.f32 %v117
    %v211 = vadd.s32 %v207, 3
    %v212 = vand.u32 %v211, 3
    %vm213 = vcmp.lt.s32.totalorder %v212, 2
    %vm214 = vcmp.eq.s32.totalorder %v212, 0
    %v215 = vxor.u32 %v209, 2147483648
    %v216 = vsel %vm214, %v208, %v215
    %vm217 = vcmp.eq.s32.totalorder %v212, 2
    %v218 = vxor.u32 %v208, 2147483648
    %v219 = vsel %vm217, %v218, %v209
    %v220 = vsel %vm213, %v216, %v219
    %v221 = vsel %vm210, nan, %v220
    %222 = vrot.lane.b32.xlu0 %v221, 1
    %v223 = vpop.permute.xlu0 %222
    %224 = vrot.lane.b32.xlu0 %v221, 2
    %v225 = vpop.permute.xlu0 %224
    %v226 = vld [vmem:[#allocation5 + $0x1] sm:$0x1]
    %v227 = vlaneseq
    %v228 = vshrl.u32 %v227, 7
    %v229 = vsub.s32 0, %v228
    %v230 = vrot.slane %v226, %v229
    %v231 = vmul.f32 %v221, %v230
    %v232 = vld [vmem:[#allocation7 + $0x1] sm:$0x1]
    %v233 = vlaneseq
    %v234 = vshrl.u32 %v233, 7
    %v235 = vsub.s32 0, %v234
    %v236 = vrot.slane %v232, %v235
    %v237 = vmul.f32 %v223, %v236
    %v238 = vadd.f32 %v231, %v237
    %v239 = vld [vmem:[#allocation8 + $0x1] sm:$0x1]
    %v240 = vlaneseq
    %v241 = vshrl.u32 %v240, 7
    %v242 = vsub.s32 0, %v241
    %v243 = vrot.slane %v239, %v242
    %v244 = vmul.f32 %v225, %v243
    %v245 = vadd.f32 %v238, %v244
    %v246 = vld [vmem:[#allocation10 + $0x1] sm:$0x1]
    %v247 = vlaneseq
    %v248 = vshrl.u32 %v247, 7
    %v249 = vsub.s32 0, %v248
    %v250 = vrot.slane %v246, %v249
    %v251 = vadd.f32 %v245, %v250
    %v252 = vand.u32 2147483647, %v251
    %vm253 = vcmp.le.f32.partialorder %v252, 0.7853982
    %vm254 = vcmp.lt.s32.totalorder %v251, 0
    %v255 = vand.u32 %v251, 2139095040
    %v256 = vshrl.u32 %v255, 23
    %v257 = vsub.s32 %v256, 127
    %v258 = vand.u32 2147483647, %v251
    %v259 = vand.u32 %v258, 8388607
    %v260 = vor.u32 %v259, 8388608
    %v261 = vsub.s32 0, %v260
    %v262 = vadd.s32 %v257, 1
    %vm263 = vcmp.gt.s32.totalorder %v262, 0
    %v264 = vsel %vm263, %v262, 0
    %v265 = vshrl.u32 %v264, 5
    %v266 = vand.u32 %v264, 31
    %v267 = vsub.s32 32, %v266
    %v268 = vshrl.u32 683565275, %v267
    %v269 = vshll.u32 683565275, %v266
    %v270 = vshrl.u32 2475754826, %v267
    %v271 = vor.u32 %v269, %v270
    %v272 = vshll.u32 2475754826, %v266
    %v273 = vshrl.u32 2131351028, %v267
    %v274 = vor.u32 %v272, %v273
    %v275 = vshll.u32 2131351028, %v266
    %v276 = vshrl.u32 2102212464, %v267
    %v277 = vor.u32 %v275, %v276
    %v278 = vshll.u32 2102212464, %v266
    %v279 = vshrl.u32 920167782, %v267
    %v280 = vor.u32 %v278, %v279
    %v281 = vshll.u32 920167782, %v266
    %v282 = vshrl.u32 1326507024, %v267
    %v283 = vor.u32 %v281, %v282
    %vm284 = vcmp.lt.s32.totalorder %v265, 1
    %vm285 = vcmp.lt.s32.totalorder %v265, 2
    %vm286 = vcmp.lt.s32.totalorder %v265, 3
    %vm287 = vcmp.lt.s32.totalorder %v265, 4
    %v288 = vsel %vm284, %v268, %v271
    %v289 = vsel %vm287, %v277, 2102212464
    %v290 = vsel %vm286, %v274, %v289
    %v291 = vsel %vm285, %v288, %v290
    %v292 = vsel %vm284, %v271, %v274
    %v293 = vsel %vm287, %v280, 920167782
    %v294 = vsel %vm286, %v277, %v293
    %v295 = vsel %vm285, %v292, %v294
    %v296 = vsel %vm284, %v274, %v277
    %v297 = vsel %vm287, %v283, 1326507024
    %v298 = vsel %vm286, %v280, %v297
    %v299 = vsel %vm285, %v296, %v298
    %v300 = vshll.u32 %v260, 8
    %v301 = vmul.u32.u64.compose %v300, %v299
    %v302 = vextract.low.u32 %v301
    %v303 = vextract.high.u32 %v301
    %v304 = vmul.u32.u64.compose %v300, %v295
    %v305 = vextract.low.u32 %v304
    %v306 = vextract.high.u32 %v304
    %v307 = vmul.u32 %v300, %v291
    %v308 = vadd.s32 %v303, %v305
    %vm309 = vc.u32 %v303, %v305
    %v310 = vadd.s32 %v306, 1
    %v311 = vsel %vm309, %v310, %v306
    %v312 = vadd.s32 %v307, %v311
    %v313 = vadd.s32 %v312, 536870912
    %v314 = vshrl.u32 %v313, 30
    %v315 = vshll.u32 %v314, 30
    %v316 = vsub.s32 %v312, %v315
    %vm317 = vcmp.lt.s32.totalorder %v316, 0
    %v318 = vsub.s32 0, %v316
    %v319 = vsel %vm317, %v318, %v316
    %v320 = vclz %v319
    %v321 = vsub.s32 %v320, 2
    %vm322 = vcmp.gt.s32.totalorder 0, %v321
    %v323 = vsel %vm322, 0, %v321
    %v324 = vsub.s32 32, %v323
    %v325 = vshll.u32 %v316, %v323
    %v326 = vshrl.u32 %v308, %v324
    %v327 = vor.u32 %v325, %v326
    %v328 = vsub.s32 4294967266, %v323
    %v329 = vadd.s32 %v328, 127
    %v330 = vshll.u32 %v329, 23
    %v331 = vor.u32 4788187, %v330
    %v332 = vand.u32 2147483647, %v331
    %v334 = vcvt.s32.f32 %v327
    %v335 = vmul.f32 %v334, %v332
    %v336 = vxor.u32 %v335, 2147483648
    %v337 = vsel %vm254, %v336, %v335
    %v338 = vsub.s32 4, %v314
    %v339 = vsel %vm254, %v338, %v314
    %v340 = vsel %vm253, %v251, %v337
    %v341 = vsel %vm253, 0, %v339
    %v342 = vcosq.f32.pop %v340
    %v343 = vsinq.f32.pop %v340
    %vm344 = vweird.f32 %v251
    %v345 = vadd.s32 %v341, 3
    %v346 = vand.u32 %v345, 3
    %vm347 = vcmp.lt.s32.totalorder %v346, 2
    %vm348 = vcmp.eq.s32.totalorder %v346, 0
    %v349 = vxor.u32 %v343, 2147483648
    %v350 = vsel %vm348, %v342, %v349
    %vm351 = vcmp.eq.s32.totalorder %v346, 2
    %v352 = vxor.u32 %v342, 2147483648
    %v353 = vsel %vm351, %v352, %v343
    %v354 = vsel %vm347, %v350, %v353
    %v355 = vsel %vm344, nan, %v354
    %356 = vrot.lane.b32.xlu0 %v355, 1
    %v357 = vpop.permute.xlu0 %356
    %358 = vrot.lane.b32.xlu0 %v355, 2
    %v359 = vpop.permute.xlu0 %358
    %v360 = vld [vmem:[#allocation5 + $0x2] sm:$0x1]
    %v361 = vlaneseq
    %v362 = vshrl.u32 %v361, 7
    %v363 = vsub.s32 0, %v362
    %v364 = vrot.slane %v360, %v363
    %v365 = vmul.f32 %v355, %v364
    %v366 = vld [vmem:[#allocation7 + $0x2] sm:$0x1]
    %v367 = vlaneseq
    %v368 = vshrl.u32 %v367, 7
    %v369 = vsub.s32 0, %v368
    %v370 = vrot.slane %v366, %v369
    %v371 = vmul.f32 %v357, %v370
    %v372 = vadd.f32 %v365, %v371
    %v373 = vld [vmem:[#allocation8 + $0x2] sm:$0x1]
    %v374 = vlaneseq
    %v375 = vshrl.u32 %v374, 7
    %v376 = vsub.s32 0, %v375
    %v377 = vrot.slane %v373, %v376
    %v378 = vmul.f32 %v359, %v377
    %v379 = vadd.f32 %v372, %v378
    %v380 = vld [vmem:[#allocation10 + $0x2] sm:$0x1]
    %v381 = vlaneseq
    %v382 = vshrl.u32 %v381, 7
    %v383 = vsub.s32 0, %v382
    %v384 = vrot.slane %v380, %v383
    %v385 = vadd.f32 %v379, %v384
    %v386 = vand.u32 2147483647, %v385
    %vm387 = vcmp.le.f32.partialorder %v386, 0.7853982
    %vm388 = vcmp.lt.s32.totalorder %v385, 0
    %v389 = vand.u32 %v385, 2139095040
    %v390 = vshrl.u32 %v389, 23
    %v391 = vsub.s32 %v390, 127
    %v392 = vand.u32 2147483647, %v385
    %v393 = vand.u32 %v392, 8388607
    %v394 = vor.u32 %v393, 8388608
    %v395 = vsub.s32 0, %v394
    %v396 = vadd.s32 %v391, 1
    %vm397 = vcmp.gt.s32.totalorder %v396, 0
    %v398 = vsel %vm397, %v396, 0
    %v399 = vshrl.u32 %v398, 5
    %v400 = vand.u32 %v398, 31
    %v401 = vsub.s32 32, %v400
    %v402 = vshrl.u32 683565275, %v401
    %v403 = vshll.u32 683565275, %v400
    %v404 = vshrl.u32 2475754826, %v401
    %v405 = vor.u32 %v403, %v404
    %v406 = vshll.u32 2475754826, %v400
    %v407 = vshrl.u32 2131351028, %v401
    %v408 = vor.u32 %v406, %v407
    %v409 = vshll.u32 2131351028, %v400
    %v410 = vshrl.u32 2102212464, %v401
    %v411 = vor.u32 %v409, %v410
    %v412 = vshll.u32 2102212464, %v400
    %v413 = vshrl.u32 920167782, %v401
    %v414 = vor.u32 %v412, %v413
    %v415 = vshll.u32 920167782, %v400
    %v416 = vshrl.u32 1326507024, %v401
    %v417 = vor.u32 %v415, %v416
    %vm418 = vcmp.lt.s32.totalorder %v399, 1
    %vm419 = vcmp.lt.s32.totalorder %v399, 2
    %vm420 = vcmp.lt.s32.totalorder %v399, 3
    %vm421 = vcmp.lt.s32.totalorder %v399, 4
    %v422 = vsel %vm418, %v402, %v405
    %v423 = vsel %vm421, %v411, 2102212464
    %v424 = vsel %vm420, %v408, %v423
    %v425 = vsel %vm419, %v422, %v424
    %v426 = vsel %vm418, %v405, %v408
    %v427 = vsel %vm421, %v414, 920167782
    %v428 = vsel %vm420, %v411, %v427
    %v429 = vsel %vm419, %v426, %v428
    %v430 = vsel %vm418, %v408, %v411
    %v431 = vsel %vm421, %v417, 1326507024
    %v432 = vsel %vm420, %v414, %v431
    %v433 = vsel %vm419, %v430, %v432
    %v434 = vshll.u32 %v394, 8
    %v435 = vmul.u32.u64.compose %v434, %v433
    %v436 = vextract.low.u32 %v435
    %v437 = vextract.high.u32 %v435
    %v438 = vmul.u32.u64.compose %v434, %v429
    %v439 = vextract.low.u32 %v438
    %v440 = vextract.high.u32 %v438
    %v441 = vmul.u32 %v434, %v425
    %v442 = vadd.s32 %v437, %v439
    %vm443 = vc.u32 %v437, %v439
    %v444 = vadd.s32 %v440, 1
    %v445 = vsel %vm443, %v444, %v440
    %v446 = vadd.s32 %v441, %v445
    %v447 = vadd.s32 %v446, 536870912
    %v448 = vshrl.u32 %v447, 30
    %v449 = vshll.u32 %v448, 30
    %v450 = vsub.s32 %v446, %v449
    %vm451 = vcmp.lt.s32.totalorder %v450, 0
    %v452 = vsub.s32 0, %v450
    %v453 = vsel %vm451, %v452, %v450
    %v454 = vclz %v453
    %v455 = vsub.s32 %v454, 2
    %vm456 = vcmp.gt.s32.totalorder 0, %v455
    %v457 = vsel %vm456, 0, %v455
    %v458 = vsub.s32 32, %v457
    %v459 = vshll.u32 %v450, %v457
    %v460 = vshrl.u32 %v442, %v458
    %v461 = vor.u32 %v459, %v460
    %v462 = vsub.s32 4294967266, %v457
    %v463 = vadd.s32 %v462, 127
    %v464 = vshll.u32 %v463, 23
    %v465 = vor.u32 4788187, %v464
    %v466 = vand.u32 2147483647, %v465
    %v468 = vcvt.s32.f32 %v461
    %v469 = vmul.f32 %v468, %v466
    %v470 = vxor.u32 %v469, 2147483648
    %v471 = vsel %vm388, %v470, %v469
    %v472 = vsub.s32 4, %v448
    %v473 = vsel %vm388, %v472, %v448
    %v474 = vsel %vm387, %v385, %v471
    %v475 = vsel %vm387, 0, %v473
    %v476 = vcosq.f32.pop %v474
    %v477 = vsinq.f32.pop %v474
    %vm478 = vweird.f32 %v385
    %v479 = vadd.s32 %v475, 3
    %v480 = vand.u32 %v479, 3
    %vm481 = vcmp.lt.s32.totalorder %v480, 2
    %vm482 = vcmp.eq.s32.totalorder %v480, 0
    %v483 = vxor.u32 %v477, 2147483648
    %v484 = vsel %vm482, %v476, %v483
    %vm485 = vcmp.eq.s32.totalorder %v480, 2
    %v486 = vxor.u32 %v476, 2147483648
    %v487 = vsel %vm485, %v486, %v477
    %v488 = vsel %vm481, %v484, %v487
    %v489 = vsel %vm478, nan, %v488
    %490 = vrot.lane.b32.xlu0 %v489, 1
    %v491 = vpop.permute.xlu0 %490
    %492 = vrot.lane.b32.xlu0 %v489, 2
    %v493 = vpop.permute.xlu0 %492
    %v494 = vld [vmem:[#allocation5 + $0x3] sm:$0x1]
    %v495 = vlaneseq
    %v496 = vshrl.u32 %v495, 7
    %v497 = vsub.s32 0, %v496
    %v498 = vrot.slane %v494, %v497
    %v499 = vmul.f32 %v489, %v498
    %v500 = vld [vmem:[#allocation7 + $0x3] sm:$0x1]
    %v501 = vlaneseq
    %v502 = vshrl.u32 %v501, 7
    %v503 = vsub.s32 0, %v502
    %v504 = vrot.slane %v500, %v503
    %v505 = vmul.f32 %v491, %v504
    %v506 = vadd.f32 %v499, %v505
    %v507 = vld [vmem:[#allocation8 + $0x3] sm:$0x1]
    %v508 = vlaneseq
    %v509 = vshrl.u32 %v508, 7
    %v510 = vsub.s32 0, %v509
    %v511 = vrot.slane %v507, %v510
    %v512 = vmul.f32 %v493, %v511
    %v513 = vadd.f32 %v506, %v512
    %v514 = vld [vmem:[#allocation10 + $0x3] sm:$0x1]
    %v515 = vlaneseq
    %v516 = vshrl.u32 %v515, 7
    %v517 = vsub.s32 0, %v516
    %v518 = vrot.slane %v514, %v517
    %v519 = vadd.f32 %v513, %v518
    %v520 = vand.u32 2147483647, %v519
    %vm521 = vcmp.le.f32.partialorder %v520, 0.7853982
    %vm522 = vcmp.lt.s32.totalorder %v519, 0
    %v523 = vand.u32 %v519, 2139095040
    %v524 = vshrl.u32 %v523, 23
    %v525 = vsub.s32 %v524, 127
    %v526 = vand.u32 2147483647, %v519
    %v527 = vand.u32 %v526, 8388607
    %v528 = vor.u32 %v527, 8388608
    %v529 = vsub.s32 0, %v528
    %v530 = vadd.s32 %v525, 1
    %vm531 = vcmp.gt.s32.totalorder %v530, 0
    %v532 = vsel %vm531, %v530, 0
    %v533 = vshrl.u32 %v532, 5
    %v534 = vand.u32 %v532, 31
    %v535 = vsub.s32 32, %v534
    %v536 = vshrl.u32 683565275, %v535
    %v537 = vshll.u32 683565275, %v534
    %v538 = vshrl.u32 2475754826, %v535
    %v539 = vor.u32 %v537, %v538
    %v540 = vshll.u32 2475754826, %v534
    %v541 = vshrl.u32 2131351028, %v535
    %v542 = vor.u32 %v540, %v541
    %v543 = vshll.u32 2131351028, %v534
    %v544 = vshrl.u32 2102212464, %v535
    %v545 = vor.u32 %v543, %v544
    %v546 = vshll.u32 2102212464, %v534
    %v547 = vshrl.u32 920167782, %v535
    %v548 = vor.u32 %v546, %v547
    %v549 = vshll.u32 920167782, %v534
    %v550 = vshrl.u32 1326507024, %v535
    %v551 = vor.u32 %v549, %v550
    %vm552 = vcmp.lt.s32.totalorder %v533, 1
    %vm553 = vcmp.lt.s32.totalorder %v533, 2
    %vm554 = vcmp.lt.s32.totalorder %v533, 3
    %vm555 = vcmp.lt.s32.totalorder %v533, 4
    %v556 = vsel %vm552, %v536, %v539
    %v557 = vsel %vm555, %v545, 2102212464
    %v558 = vsel %vm554, %v542, %v557
    %v559 = vsel %vm553, %v556, %v558
    %v560 = vsel %vm552, %v539, %v542
    %v561 = vsel %vm555, %v548, 920167782
    %v562 = vsel %vm554, %v545, %v561
    %v563 = vsel %vm553, %v560, %v562
    %v564 = vsel %vm552, %v542, %v545
    %v565 = vsel %vm555, %v551, 1326507024
    %v566 = vsel %vm554, %v548, %v565
    %v567 = vsel %vm553, %v564, %v566
    %v568 = vshll.u32 %v528, 8
    %v569 = vmul.u32.u64.compose %v568, %v567
    %v570 = vextract.low.u32 %v569
    %v571 = vextract.high.u32 %v569
    %v572 = vmul.u32.u64.compose %v568, %v563
    %v573 = vextract.low.u32 %v572
    %v574 = vextract.high.u32 %v572
    %v575 = vmul.u32 %v568, %v559
    %v576 = vadd.s32 %v571, %v573
    %vm577 = vc.u32 %v571, %v573
    %v578 = vadd.s32 %v574, 1
    %v579 = vsel %vm577, %v578, %v574
    %v580 = vadd.s32 %v575, %v579
    %v581 = vadd.s32 %v580, 536870912
    %v582 = vshrl.u32 %v581, 30
    %v583 = vshll.u32 %v582, 30
    %v584 = vsub.s32 %v580, %v583
    %vm585 = vcmp.lt.s32.totalorder %v584, 0
    %v586 = vsub.s32 0, %v584
    %v587 = vsel %vm585, %v586, %v584
    %v588 = vclz %v587
    %v589 = vsub.s32 %v588, 2
    %vm590 = vcmp.gt.s32.totalorder 0, %v589
    %v591 = vsel %vm590, 0, %v589
    %v592 = vsub.s32 32, %v591
    %v593 = vshll.u32 %v584, %v591
    %v594 = vshrl.u32 %v576, %v592
    %v595 = vor.u32 %v593, %v594
    %v596 = vsub.s32 4294967266, %v591
    %v597 = vadd.s32 %v596, 127
    %v598 = vshll.u32 %v597, 23
    %v599 = vor.u32 4788187, %v598
    %v600 = vand.u32 2147483647, %v599
    %v602 = vcvt.s32.f32 %v595
    %v603 = vmul.f32 %v602, %v600
    %v604 = vxor.u32 %v603, 2147483648
    %v605 = vsel %vm522, %v604, %v603
    %v606 = vsub.s32 4, %v582
    %v607 = vsel %vm522, %v606, %v582
    %v608 = vsel %vm521, %v519, %v605
    %v609 = vsel %vm521, 0, %v607
    %v610 = vcosq.f32.pop %v608
    %v611 = vsinq.f32.pop %v608
    %vm612 = vweird.f32 %v519
    %v613 = vadd.s32 %v609, 3
    %v614 = vand.u32 %v613, 3
    %vm615 = vcmp.lt.s32.totalorder %v614, 2
    %vm616 = vcmp.eq.s32.totalorder %v614, 0
    %v617 = vxor.u32 %v611, 2147483648
    %v618 = vsel %vm616, %v610, %v617
    %vm619 = vcmp.eq.s32.totalorder %v614, 2
    %v620 = vxor.u32 %v610, 2147483648
    %v621 = vsel %vm619, %v620, %v611
    %v622 = vsel %vm615, %v618, %v621
    %v623 = vsel %vm612, nan, %v622
    %624 = vrot.lane.b32.xlu0 %v623, 1
    %v625 = vpop.permute.xlu0 %624
    %626 = vrot.lane.b32.xlu0 %v623, 2
    %v627 = vpop.permute.xlu0 %626
    %v628 = vld [vmem:[#allocation5 + $0x4] sm:$0x1]
    %v629 = vlaneseq
    %v630 = vshrl.u32 %v629, 7
    %v631 = vsub.s32 0, %v630
    %v632 = vrot.slane %v628, %v631
    %v633 = vmul.f32 %v623, %v632
    %v634 = vld [vmem:[#allocation7 + $0x4] sm:$0x1]
    %v635 = vlaneseq
    %v636 = vshrl.u32 %v635, 7
    %v637 = vsub.s32 0, %v636
    %v638 = vrot.slane %v634, %v637
    %v639 = vmul.f32 %v625, %v638
    %v640 = vadd.f32 %v633, %v639
    %v641 = vld [vmem:[#allocation8 + $0x4] sm:$0x1]
    %v642 = vlaneseq
    %v643 = vshrl.u32 %v642, 7
    %v644 = vsub.s32 0, %v643
    %v645 = vrot.slane %v641, %v644
    %v646 = vmul.f32 %v627, %v645
    %v647 = vadd.f32 %v640, %v646
    %v648 = vld [vmem:[#allocation10 + $0x4] sm:$0x1]
    %v649 = vlaneseq
    %v650 = vshrl.u32 %v649, 7
    %v651 = vsub.s32 0, %v650
    %v652 = vrot.slane %v648, %v651
    %v653 = vadd.f32 %v647, %v652
    %v654 = vand.u32 2147483647, %v653
    %vm655 = vcmp.le.f32.partialorder %v654, 0.7853982
    %vm656 = vcmp.lt.s32.totalorder %v653, 0
    %v657 = vand.u32 %v653, 2139095040
    %v658 = vshrl.u32 %v657, 23
    %v659 = vsub.s32 %v658, 127
    %v660 = vand.u32 2147483647, %v653
    %v661 = vand.u32 %v660, 8388607
    %v662 = vor.u32 %v661, 8388608
    %v663 = vsub.s32 0, %v662
    %v664 = vadd.s32 %v659, 1
    %vm665 = vcmp.gt.s32.totalorder %v664, 0
    %v666 = vsel %vm665, %v664, 0
    %v667 = vshrl.u32 %v666, 5
    %v668 = vand.u32 %v666, 31
    %v669 = vsub.s32 32, %v668
    %v670 = vshrl.u32 683565275, %v669
    %v671 = vshll.u32 683565275, %v668
    %v672 = vshrl.u32 2475754826, %v669
    %v673 = vor.u32 %v671, %v672
    %v674 = vshll.u32 2475754826, %v668
    %v675 = vshrl.u32 2131351028, %v669
    %v676 = vor.u32 %v674, %v675
    %v677 = vshll.u32 2131351028, %v668
    %v678 = vshrl.u32 2102212464, %v669
    %v679 = vor.u32 %v677, %v678
    %v680 = vshll.u32 2102212464, %v668
    %v681 = vshrl.u32 920167782, %v669
    %v682 = vor.u32 %v680, %v681
    %v683 = vshll.u32 920167782, %v668
    %v684 = vshrl.u32 1326507024, %v669
    %v685 = vor.u32 %v683, %v684
    %vm686 = vcmp.lt.s32.totalorder %v667, 1
    %vm687 = vcmp.lt.s32.totalorder %v667, 2
    %vm688 = vcmp.lt.s32.totalorder %v667, 3
    %vm689 = vcmp.lt.s32.totalorder %v667, 4
    %v690 = vsel %vm686, %v670, %v673
    %v691 = vsel %vm689, %v679, 2102212464
    %v692 = vsel %vm688, %v676, %v691
    %v693 = vsel %vm687, %v690, %v692
    %v694 = vsel %vm686, %v673, %v676
    %v695 = vsel %vm689, %v682, 920167782
    %v696 = vsel %vm688, %v679, %v695
    %v697 = vsel %vm687, %v694, %v696
    %v698 = vsel %vm686, %v676, %v679
    %v699 = vsel %vm689, %v685, 1326507024
    %v700 = vsel %vm688, %v682, %v699
    %v701 = vsel %vm687, %v698, %v700
    %v702 = vshll.u32 %v662, 8
    %v703 = vmul.u32.u64.compose %v702, %v701
    %v704 = vextract.low.u32 %v703
    %v705 = vextract.high.u32 %v703
    %v706 = vmul.u32.u64.compose %v702, %v697
    %v707 = vextract.low.u32 %v706
    %v708 = vextract.high.u32 %v706
    %v709 = vmul.u32 %v702, %v693
    %v710 = vadd.s32 %v705, %v707
    %vm711 = vc.u32 %v705, %v707
    %v712 = vadd.s32 %v708, 1
    %v713 = vsel %vm711, %v712, %v708
    %v714 = vadd.s32 %v709, %v713
    %v715 = vadd.s32 %v714, 536870912
    %v716 = vshrl.u32 %v715, 30
    %v717 = vshll.u32 %v716, 30
    %v718 = vsub.s32 %v714, %v717
    %vm719 = vcmp.lt.s32.totalorder %v718, 0
    %v720 = vsub.s32 0, %v718
    %v721 = vsel %vm719, %v720, %v718
    %v722 = vclz %v721
    %v723 = vsub.s32 %v722, 2
    %vm724 = vcmp.gt.s32.totalorder 0, %v723
    %v725 = vsel %vm724, 0, %v723
    %v726 = vsub.s32 32, %v725
    %v727 = vshll.u32 %v718, %v725
    %v728 = vshrl.u32 %v710, %v726
    %v729 = vor.u32 %v727, %v728
    %v730 = vsub.s32 4294967266, %v725
    %v731 = vadd.s32 %v730, 127
    %v732 = vshll.u32 %v731, 23
    %v733 = vor.u32 4788187, %v732
    %v734 = vand.u32 2147483647, %v733
    %v736 = vcvt.s32.f32 %v729
    %v737 = vmul.f32 %v736, %v734
    %v738 = vxor.u32 %v737, 2147483648
    %v739 = vsel %vm656, %v738, %v737
    %v740 = vsub.s32 4, %v716
    %v741 = vsel %vm656, %v740, %v716
    %v742 = vsel %vm655, %v653, %v739
    %v743 = vsel %vm655, 0, %v741
    %v744 = vcosq.f32.pop %v742
    %v745 = vsinq.f32.pop %v742
    %vm746 = vweird.f32 %v653
    %v747 = vadd.s32 %v743, 3
    %v748 = vand.u32 %v747, 3
    %vm749 = vcmp.lt.s32.totalorder %v748, 2
    %vm750 = vcmp.eq.s32.totalorder %v748, 0
    %v751 = vxor.u32 %v745, 2147483648
    %v752 = vsel %vm750, %v744, %v751
    %vm753 = vcmp.eq.s32.totalorder %v748, 2
    %v754 = vxor.u32 %v744, 2147483648
    %v755 = vsel %vm753, %v754, %v745
    %v756 = vsel %vm749, %v752, %v755
    %v757 = vsel %vm746, nan, %v756
    %758 = vrot.lane.b32.xlu0 %v757, 1
    %v759 = vpop.permute.xlu0 %758
    %760 = vrot.lane.b32.xlu0 %v757, 2
    %v761 = vpop.permute.xlu0 %760
    %v762 = vld [vmem:[#allocation5 + $0x5] sm:$0x1]
    %v763 = vlaneseq
    %v764 = vshrl.u32 %v763, 7
    %v765 = vsub.s32 0, %v764
    %v766 = vrot.slane %v762, %v765
    %v767 = vmul.f32 %v757, %v766
    %v768 = vld [vmem:[#allocation7 + $0x5] sm:$0x1]
    %v769 = vlaneseq
    %v770 = vshrl.u32 %v769, 7
    %v771 = vsub.s32 0, %v770
    %v772 = vrot.slane %v768, %v771
    %v773 = vmul.f32 %v759, %v772
    %v774 = vadd.f32 %v767, %v773
    %v775 = vld [vmem:[#allocation8 + $0x5] sm:$0x1]
    %v776 = vlaneseq
    %v777 = vshrl.u32 %v776, 7
    %v778 = vsub.s32 0, %v777
    %v779 = vrot.slane %v775, %v778
    %v780 = vmul.f32 %v761, %v779
    %v781 = vadd.f32 %v774, %v780
    %v782 = vld [vmem:[#allocation10 + $0x5] sm:$0x1]
    %v783 = vlaneseq
    %v784 = vshrl.u32 %v783, 7
    %v785 = vsub.s32 0, %v784
    %v786 = vrot.slane %v782, %v785
    %v787 = vadd.f32 %v781, %v786
    %v788 = vand.u32 2147483647, %v787
    %vm789 = vcmp.le.f32.partialorder %v788, 0.7853982
    %vm790 = vcmp.lt.s32.totalorder %v787, 0
    %v791 = vand.u32 %v787, 2139095040
    %v792 = vshrl.u32 %v791, 23
    %v793 = vsub.s32 %v792, 127
    %v794 = vand.u32 2147483647, %v787
    %v795 = vand.u32 %v794, 8388607
    %v796 = vor.u32 %v795, 8388608
    %v797 = vsub.s32 0, %v796
    %v798 = vadd.s32 %v793, 1
    %vm799 = vcmp.gt.s32.totalorder %v798, 0
    %v800 = vsel %vm799, %v798, 0
    %v801 = vshrl.u32 %v800, 5
    %v802 = vand.u32 %v800, 31
    %v803 = vsub.s32 32, %v802
    %v804 = vshrl.u32 683565275, %v803
    %v805 = vshll.u32 683565275, %v802
    %v806 = vshrl.u32 2475754826, %v803
    %v807 = vor.u32 %v805, %v806
    %v808 = vshll.u32 2475754826, %v802
    %v809 = vshrl.u32 2131351028, %v803
    %v810 = vor.u32 %v808, %v809
    %v811 = vshll.u32 2131351028, %v802
    %v812 = vshrl.u32 2102212464, %v803
    %v813 = vor.u32 %v811, %v812
    %v814 = vshll.u32 2102212464, %v802
    %v815 = vshrl.u32 920167782, %v803
    %v816 = vor.u32 %v814, %v815
    %v817 = vshll.u32 920167782, %v802
    %v818 = vshrl.u32 1326507024, %v803
    %v819 = vor.u32 %v817, %v818
    %vm820 = vcmp.lt.s32.totalorder %v801, 1
    %vm821 = vcmp.lt.s32.totalorder %v801, 2
    %vm822 = vcmp.lt.s32.totalorder %v801, 3
    %vm823 = vcmp.lt.s32.totalorder %v801, 4
    %v824 = vsel %vm820, %v804, %v807
    %v825 = vsel %vm823, %v813, 2102212464
    %v826 = vsel %vm822, %v810, %v825
    %v827 = vsel %vm821, %v824, %v826
    %v828 = vsel %vm820, %v807, %v810
    %v829 = vsel %vm823, %v816, 920167782
    %v830 = vsel %vm822, %v813, %v829
    %v831 = vsel %vm821, %v828, %v830
    %v832 = vsel %vm820, %v810, %v813
    %v833 = vsel %vm823, %v819, 1326507024
    %v834 = vsel %vm822, %v816, %v833
    %v835 = vsel %vm821, %v832, %v834
    %v836 = vshll.u32 %v796, 8
    %v837 = vmul.u32.u64.compose %v836, %v835
    %v838 = vextract.low.u32 %v837
    %v839 = vextract.high.u32 %v837
    %v840 = vmul.u32.u64.compose %v836, %v831
    %v841 = vextract.low.u32 %v840
    %v842 = vextract.high.u32 %v840
    %v843 = vmul.u32 %v836, %v827
    %v844 = vadd.s32 %v839, %v841
    %vm845 = vc.u32 %v839, %v841
    %v846 = vadd.s32 %v842, 1
    %v847 = vsel %vm845, %v846, %v842
    %v848 = vadd.s32 %v843, %v847
    %v849 = vadd.s32 %v848, 536870912
    %v850 = vshrl.u32 %v849, 30
    %v851 = vshll.u32 %v850, 30
    %v852 = vsub.s32 %v848, %v851
    %vm853 = vcmp.lt.s32.totalorder %v852, 0
    %v854 = vsub.s32 0, %v852
    %v855 = vsel %vm853, %v854, %v852
    %v856 = vclz %v855
    %v857 = vsub.s32 %v856, 2
    %vm858 = vcmp.gt.s32.totalorder 0, %v857
    %v859 = vsel %vm858, 0, %v857
    %v860 = vsub.s32 32, %v859
    %v861 = vshll.u32 %v852, %v859
    %v862 = vshrl.u32 %v844, %v860
    %v863 = vor.u32 %v861, %v862
    %v864 = vsub.s32 4294967266, %v859
    %v865 = vadd.s32 %v864, 127
    %v866 = vshll.u32 %v865, 23
    %v867 = vor.u32 4788187, %v866
    %v868 = vand.u32 2147483647, %v867
    %v870 = vcvt.s32.f32 %v863
    %v871 = vmul.f32 %v870, %v868
    %v872 = vxor.u32 %v871, 2147483648
    %v873 = vsel %vm790, %v872, %v871
    %v874 = vsub.s32 4, %v850
    %v875 = vsel %vm790, %v874, %v850
    %v876 = vsel %vm789, %v787, %v873
    %v877 = vsel %vm789, 0, %v875
    %v878 = vcosq.f32.pop %v876
    %v879 = vsinq.f32.pop %v876
    %vm880 = vweird.f32 %v787
    %v881 = vadd.s32 %v877, 3
    %v882 = vand.u32 %v881, 3
    %vm883 = vcmp.lt.s32.totalorder %v882, 2
    %vm884 = vcmp.eq.s32.totalorder %v882, 0
    %v885 = vxor.u32 %v879, 2147483648
    %v886 = vsel %vm884, %v878, %v885
    %vm887 = vcmp.eq.s32.totalorder %v882, 2
    %v888 = vxor.u32 %v878, 2147483648
    %v889 = vsel %vm887, %v888, %v879
    %v890 = vsel %vm883, %v886, %v889
    %v891 = vsel %vm880, nan, %v890
    %892 = vrot.lane.b32.xlu0 %v891, 1
    %v893 = vpop.permute.xlu0 %892
    %894 = vrot.lane.b32.xlu0 %v891, 2
    %v895 = vpop.permute.xlu0 %894
    %v896 = vld [vmem:[#allocation5 + $0x6] sm:$0x1]
    %v897 = vlaneseq
    %v898 = vshrl.u32 %v897, 7
    %v899 = vsub.s32 0, %v898
    %v900 = vrot.slane %v896, %v899
    %v901 = vmul.f32 %v891, %v900
    %v902 = vld [vmem:[#allocation7 + $0x6] sm:$0x1]
    %v903 = vlaneseq
    %v904 = vshrl.u32 %v903, 7
    %v905 = vsub.s32 0, %v904
    %v906 = vrot.slane %v902, %v905
    %v907 = vmul.f32 %v893, %v906
    %v908 = vadd.f32 %v901, %v907
    %v909 = vld [vmem:[#allocation8 + $0x6] sm:$0x1]
    %v910 = vlaneseq
    %v911 = vshrl.u32 %v910, 7
    %v912 = vsub.s32 0, %v911
    %v913 = vrot.slane %v909, %v912
    %v914 = vmul.f32 %v895, %v913
    %v915 = vadd.f32 %v908, %v914
    %v916 = vld [vmem:[#allocation10 + $0x6] sm:$0x1]
    %v917 = vlaneseq
    %v918 = vshrl.u32 %v917, 7
    %v919 = vsub.s32 0, %v918
    %v920 = vrot.slane %v916, %v919
    %v921 = vadd.f32 %v915, %v920
    %v922 = vand.u32 2147483647, %v921
    %vm923 = vcmp.le.f32.partialorder %v922, 0.7853982
    %vm924 = vcmp.lt.s32.totalorder %v921, 0
    %v925 = vand.u32 %v921, 2139095040
    %v926 = vshrl.u32 %v925, 23
    %v927 = vsub.s32 %v926, 127
    %v928 = vand.u32 2147483647, %v921
    %v929 = vand.u32 %v928, 8388607
    %v930 = vor.u32 %v929, 8388608
    %v931 = vsub.s32 0, %v930
    %v932 = vadd.s32 %v927, 1
    %vm933 = vcmp.gt.s32.totalorder %v932, 0
    %v934 = vsel %vm933, %v932, 0
    %v935 = vshrl.u32 %v934, 5
    %v936 = vand.u32 %v934, 31
    %v937 = vsub.s32 32, %v936
    %v938 = vshrl.u32 683565275, %v937
    %v939 = vshll.u32 683565275, %v936
    %v940 = vshrl.u32 2475754826, %v937
    %v941 = vor.u32 %v939, %v940
    %v942 = vshll.u32 2475754826, %v936
    %v943 = vshrl.u32 2131351028, %v937
    %v944 = vor.u32 %v942, %v943
    %v945 = vshll.u32 2131351028, %v936
    %v946 = vshrl.u32 2102212464, %v937
    %v947 = vor.u32 %v945, %v946
    %v948 = vshll.u32 2102212464, %v936
    %v949 = vshrl.u32 920167782, %v937
    %v950 = vor.u32 %v948, %v949
    %v951 = vshll.u32 920167782, %v936
    %v952 = vshrl.u32 1326507024, %v937
    %v953 = vor.u32 %v951, %v952
    %vm954 = vcmp.lt.s32.totalorder %v935, 1
    %vm955 = vcmp.lt.s32.totalorder %v935, 2
    %vm956 = vcmp.lt.s32.totalorder %v935, 3
    %vm957 = vcmp.lt.s32.totalorder %v935, 4
    %v958 = vsel %vm954, %v938, %v941
    %v959 = vsel %vm957, %v947, 2102212464
    %v960 = vsel %vm956, %v944, %v959
    %v961 = vsel %vm955, %v958, %v960
    %v962 = vsel %vm954, %v941, %v944
    %v963 = vsel %vm957, %v950, 920167782
    %v964 = vsel %vm956, %v947, %v963
    %v965 = vsel %vm955, %v962, %v964
    %v966 = vsel %vm954, %v944, %v947
    %v967 = vsel %vm957, %v953, 1326507024
    %v968 = vsel %vm956, %v950, %v967
    %v969 = vsel %vm955, %v966, %v968
    %v970 = vshll.u32 %v930, 8
    %v971 = vmul.u32.u64.compose %v970, %v969
    %v972 = vextract.low.u32 %v971
    %v973 = vextract.high.u32 %v971
    %v974 = vmul.u32.u64.compose %v970, %v965
    %v975 = vextract.low.u32 %v974
    %v976 = vextract.high.u32 %v974
    %v977 = vmul.u32 %v970, %v961
    %v978 = vadd.s32 %v973, %v975
    %vm979 = vc.u32 %v973, %v975
    %v980 = vadd.s32 %v976, 1
    %v981 = vsel %vm979, %v980, %v976
    %v982 = vadd.s32 %v977, %v981
    %v983 = vadd.s32 %v982, 536870912
    %v984 = vshrl.u32 %v983, 30
    %v985 = vshll.u32 %v984, 30
    %v986 = vsub.s32 %v982, %v985
    %vm987 = vcmp.lt.s32.totalorder %v986, 0
    %v988 = vsub.s32 0, %v986
    %v989 = vsel %vm987, %v988, %v986
    %v990 = vclz %v989
    %v991 = vsub.s32 %v990, 2
    %vm992 = vcmp.gt.s32.totalorder 0, %v991
    %v993 = vsel %vm992, 0, %v991
    %v994 = vsub.s32 32, %v993
    %v995 = vshll.u32 %v986, %v993
    %v996 = vshrl.u32 %v978, %v994
    %v997 = vor.u32 %v995, %v996
    %v998 = vsub.s32 4294967266, %v993
    %v999 = vadd.s32 %v998, 127
    %v1000 = vshll.u32 %v999, 23
    %v1001 = vor.u32 4788187, %v1000
    %v1002 = vand.u32 2147483647, %v1001
    %v1004 = vcvt.s32.f32 %v997
    %v1005 = vmul.f32 %v1004, %v1002
    %v1006 = vxor.u32 %v1005, 2147483648
    %v1007 = vsel %vm924, %v1006, %v1005
    %v1008 = vsub.s32 4, %v984
    %v1009 = vsel %vm924, %v1008, %v984
    %v1010 = vsel %vm923, %v921, %v1007
    %v1011 = vsel %vm923, 0, %v1009
    %v1012 = vcosq.f32.pop %v1010
    %v1013 = vsinq.f32.pop %v1010
    %vm1014 = vweird.f32 %v921
    %v1015 = vadd.s32 %v1011, 3
    %v1016 = vand.u32 %v1015, 3
    %vm1017 = vcmp.lt.s32.totalorder %v1016, 2
    %vm1018 = vcmp.eq.s32.totalorder %v1016, 0
    %v1019 = vxor.u32 %v1013, 2147483648
    %v1020 = vsel %vm1018, %v1012, %v1019
    %vm1021 = vcmp.eq.s32.totalorder %v1016, 2
    %v1022 = vxor.u32 %v1012, 2147483648
    %v1023 = vsel %vm1021, %v1022, %v1013
    %v1024 = vsel %vm1017, %v1020, %v1023
    %v1025 = vsel %vm1014, nan, %v1024
    %1026 = vrot.lane.b32.xlu0 %v1025, 1
    %v1027 = vpop.permute.xlu0 %1026
    %1028 = vrot.lane.b32.xlu0 %v1025, 2
    %v1029 = vpop.permute.xlu0 %1028
    %v1030 = vld [vmem:[#allocation5 + $0x7] sm:$0x1]
    %v1031 = vlaneseq
    %v1032 = vshrl.u32 %v1031, 7
    %v1033 = vsub.s32 0, %v1032
    %v1034 = vrot.slane %v1030, %v1033
    %v1035 = vmul.f32 %v1025, %v1034
    %v1036 = vld [vmem:[#allocation7 + $0x7] sm:$0x1]
    %v1037 = vlaneseq
    %v1038 = vshrl.u32 %v1037, 7
    %v1039 = vsub.s32 0, %v1038
    %v1040 = vrot.slane %v1036, %v1039
    %v1041 = vmul.f32 %v1027, %v1040
    %v1042 = vadd.f32 %v1035, %v1041
    %v1043 = vld [vmem:[#allocation8 + $0x7] sm:$0x1]
    %v1044 = vlaneseq
    %v1045 = vshrl.u32 %v1044, 7
    %v1046 = vsub.s32 0, %v1045
    %v1047 = vrot.slane %v1043, %v1046
    %v1048 = vmul.f32 %v1029, %v1047
    %v1049 = vadd.f32 %v1042, %v1048
    %v1050 = vld [vmem:[#allocation10 + $0x7] sm:$0x1]
    %v1051 = vlaneseq
    %v1052 = vshrl.u32 %v1051, 7
    %v1053 = vsub.s32 0, %v1052
    %v1054 = vrot.slane %v1050, %v1053
    %v1055 = vadd.f32 %v1049, %v1054
    %v1056 = vand.u32 2147483647, %v1055
    %vm1057 = vcmp.le.f32.partialorder %v1056, 0.7853982
    %vm1058 = vcmp.lt.s32.totalorder %v1055, 0
    %v1059 = vand.u32 %v1055, 2139095040
    %v1060 = vshrl.u32 %v1059, 23
    %v1061 = vsub.s32 %v1060, 127
    %v1062 = vand.u32 2147483647, %v1055
    %v1063 = vand.u32 %v1062, 8388607
    %v1064 = vor.u32 %v1063, 8388608
    %v1065 = vsub.s32 0, %v1064
    %v1066 = vadd.s32 %v1061, 1
    %vm1067 = vcmp.gt.s32.totalorder %v1066, 0
    %v1068 = vsel %vm1067, %v1066, 0
    %v1069 = vshrl.u32 %v1068, 5
    %v1070 = vand.u32 %v1068, 31
    %v1071 = vsub.s32 32, %v1070
    %v1072 = vshrl.u32 683565275, %v1071
    %v1073 = vshll.u32 683565275, %v1070
    %v1074 = vshrl.u32 2475754826, %v1071
    %v1075 = vor.u32 %v1073, %v1074
    %v1076 = vshll.u32 2475754826, %v1070
    %v1077 = vshrl.u32 2131351028, %v1071
    %v1078 = vor.u32 %v1076, %v1077
    %v1079 = vshll.u32 2131351028, %v1070
    %v1080 = vshrl.u32 2102212464, %v1071
    %v1081 = vor.u32 %v1079, %v1080
    %v1082 = vshll.u32 2102212464, %v1070
    %v1083 = vshrl.u32 920167782, %v1071
    %v1084 = vor.u32 %v1082, %v1083
    %v1085 = vshll.u32 920167782, %v1070
    %v1086 = vshrl.u32 1326507024, %v1071
    %v1087 = vor.u32 %v1085, %v1086
    %vm1088 = vcmp.lt.s32.totalorder %v1069, 1
    %vm1089 = vcmp.lt.s32.totalorder %v1069, 2
    %vm1090 = vcmp.lt.s32.totalorder %v1069, 3
    %vm1091 = vcmp.lt.s32.totalorder %v1069, 4
    %v1092 = vsel %vm1088, %v1072, %v1075
    %v1093 = vsel %vm1091, %v1081, 2102212464
    %v1094 = vsel %vm1090, %v1078, %v1093
    %v1095 = vsel %vm1089, %v1092, %v1094
    %v1096 = vsel %vm1088, %v1075, %v1078
    %v1097 = vsel %vm1091, %v1084, 920167782
    %v1098 = vsel %vm1090, %v1081, %v1097
    %v1099 = vsel %vm1089, %v1096, %v1098
    %v1100 = vsel %vm1088, %v1078, %v1081
    %v1101 = vsel %vm1091, %v1087, 1326507024
    %v1102 = vsel %vm1090, %v1084, %v1101
    %v1103 = vsel %vm1089, %v1100, %v1102
    %v1104 = vshll.u32 %v1064, 8
    %v1105 = vmul.u32.u64.compose %v1104, %v1103
    %v1106 = vextract.low.u32 %v1105
    %v1107 = vextract.high.u32 %v1105
    %v1108 = vmul.u32.u64.compose %v1104, %v1099
    %v1109 = vextract.low.u32 %v1108
    %v1110 = vextract.high.u32 %v1108
    %v1111 = vmul.u32 %v1104, %v1095
    %v1112 = vadd.s32 %v1107, %v1109
    %vm1113 = vc.u32 %v1107, %v1109
    %v1114 = vadd.s32 %v1110, 1
    %v1115 = vsel %vm1113, %v1114, %v1110
    %v1116 = vadd.s32 %v1111, %v1115
    %v1117 = vadd.s32 %v1116, 536870912
    %v1118 = vshrl.u32 %v1117, 30
    %v1119 = vshll.u32 %v1118, 30
    %v1120 = vsub.s32 %v1116, %v1119
    %vm1121 = vcmp.lt.s32.totalorder %v1120, 0
    %v1122 = vsub.s32 0, %v1120
    %v1123 = vsel %vm1121, %v1122, %v1120
    %v1124 = vclz %v1123
    %v1125 = vsub.s32 %v1124, 2
    %vm1126 = vcmp.gt.s32.totalorder 0, %v1125
    %v1127 = vsel %vm1126, 0, %v1125
    %v1128 = vsub.s32 32, %v1127
    %v1129 = vshll.u32 %v1120, %v1127
    %v1130 = vshrl.u32 %v1112, %v1128
    %v1131 = vor.u32 %v1129, %v1130
    %v1132 = vsub.s32 4294967266, %v1127
    %v1133 = vadd.s32 %v1132, 127
    %v1134 = vshll.u32 %v1133, 23
    %v1135 = vor.u32 4788187, %v1134
    %v1136 = vand.u32 2147483647, %v1135
    %v1138 = vcvt.s32.f32 %v1131
    %v1139 = vmul.f32 %v1138, %v1136
    %v1140 = vxor.u32 %v1139, 2147483648
    %v1141 = vsel %vm1058, %v1140, %v1139
    %v1142 = vsub.s32 4, %v1118
    %v1143 = vsel %vm1058, %v1142, %v1118
    %v1144 = vsel %vm1057, %v1055, %v1141
    %v1145 = vsel %vm1057, 0, %v1143
    %v1146 = vcosq.f32.pop %v1144
    %v1147 = vsinq.f32.pop %v1144
    %vm1148 = vweird.f32 %v1055
    %v1149 = vadd.s32 %v1145, 3
    %v1150 = vand.u32 %v1149, 3
    %vm1151 = vcmp.lt.s32.totalorder %v1150, 2
    %vm1152 = vcmp.eq.s32.totalorder %v1150, 0
    %v1153 = vxor.u32 %v1147, 2147483648
    %v1154 = vsel %vm1152, %v1146, %v1153
    %vm1155 = vcmp.eq.s32.totalorder %v1150, 2
    %v1156 = vxor.u32 %v1146, 2147483648
    %v1157 = vsel %vm1155, %v1156, %v1147
    %v1158 = vsel %vm1151, %v1154, %v1157
    %v1159 = vsel %vm1148, nan, %v1158
    %1160 = vrot.lane.b32.xlu0 %v1159, 1
    %v1161 = vpop.permute.xlu0 %1160
    %1162 = vrot.lane.b32.xlu0 %v1159, 2
    %v1163 = vpop.permute.xlu0 %1162
    %v1164 = vld [vmem:[#allocation5 + $0x8] sm:$0x1]
    %v1165 = vlaneseq
    %v1166 = vshrl.u32 %v1165, 7
    %v1167 = vsub.s32 0, %v1166
    %v1168 = vrot.slane %v1164, %v1167
    %v1169 = vmul.f32 %v1159, %v1168
    %v1170 = vld [vmem:[#allocation7 + $0x8] sm:$0x1]
    %v1171 = vlaneseq
    %v1172 = vshrl.u32 %v1171, 7
    %v1173 = vsub.s32 0, %v1172
    %v1174 = vrot.slane %v1170, %v1173
    %v1175 = vmul.f32 %v1161, %v1174
    %v1176 = vadd.f32 %v1169, %v1175
    %v1177 = vld [vmem:[#allocation8 + $0x8] sm:$0x1]
    %v1178 = vlaneseq
    %v1179 = vshrl.u32 %v1178, 7
    %v1180 = vsub.s32 0, %v1179
    %v1181 = vrot.slane %v1177, %v1180
    %v1182 = vmul.f32 %v1163, %v1181
    %v1183 = vadd.f32 %v1176, %v1182
    %v1184 = vld [vmem:[#allocation10 + $0x8] sm:$0x1]
    %v1185 = vlaneseq
    %v1186 = vshrl.u32 %v1185, 7
    %v1187 = vsub.s32 0, %v1186
    %v1188 = vrot.slane %v1184, %v1187
    %v1189 = vadd.f32 %v1183, %v1188
    %v1190 = vand.u32 2147483647, %v1189
    %vm1191 = vcmp.le.f32.partialorder %v1190, 0.7853982
    %vm1192 = vcmp.lt.s32.totalorder %v1189, 0
    %v1193 = vand.u32 %v1189, 2139095040
    %v1194 = vshrl.u32 %v1193, 23
    %v1195 = vsub.s32 %v1194, 127
    %v1196 = vand.u32 2147483647, %v1189
    %v1197 = vand.u32 %v1196, 8388607
    %v1198 = vor.u32 %v1197, 8388608
    %v1199 = vsub.s32 0, %v1198
    %v1200 = vadd.s32 %v1195, 1
    %vm1201 = vcmp.gt.s32.totalorder %v1200, 0
    %v1202 = vsel %vm1201, %v1200, 0
    %v1203 = vshrl.u32 %v1202, 5
    %v1204 = vand.u32 %v1202, 31
    %v1205 = vsub.s32 32, %v1204
    %v1206 = vshrl.u32 683565275, %v1205
    %v1207 = vshll.u32 683565275, %v1204
    %v1208 = vshrl.u32 2475754826, %v1205
    %v1209 = vor.u32 %v1207, %v1208
    %v1210 = vshll.u32 2475754826, %v1204
    %v1211 = vshrl.u32 2131351028, %v1205
    %v1212 = vor.u32 %v1210, %v1211
    %v1213 = vshll.u32 2131351028, %v1204
    %v1214 = vshrl.u32 2102212464, %v1205
    %v1215 = vor.u32 %v1213, %v1214
    %v1216 = vshll.u32 2102212464, %v1204
    %v1217 = vshrl.u32 920167782, %v1205
    %v1218 = vor.u32 %v1216, %v1217
    %v1219 = vshll.u32 920167782, %v1204
    %v1220 = vshrl.u32 1326507024, %v1205
    %v1221 = vor.u32 %v1219, %v1220
    %vm1222 = vcmp.lt.s32.totalorder %v1203, 1
    %vm1223 = vcmp.lt.s32.totalorder %v1203, 2
    %vm1224 = vcmp.lt.s32.totalorder %v1203, 3
    %vm1225 = vcmp.lt.s32.totalorder %v1203, 4
    %v1226 = vsel %vm1222, %v1206, %v1209
    %v1227 = vsel %vm1225, %v1215, 2102212464
    %v1228 = vsel %vm1224, %v1212, %v1227
    %v1229 = vsel %vm1223, %v1226, %v1228
    %v1230 = vsel %vm1222, %v1209, %v1212
    %v1231 = vsel %vm1225, %v1218, 920167782
    %v1232 = vsel %vm1224, %v1215, %v1231
    %v1233 = vsel %vm1223, %v1230, %v1232
    %v1234 = vsel %vm1222, %v1212, %v1215
    %v1235 = vsel %vm1225, %v1221, 1326507024
    %v1236 = vsel %vm1224, %v1218, %v1235
    %v1237 = vsel %vm1223, %v1234, %v1236
    %v1238 = vshll.u32 %v1198, 8
    %v1239 = vmul.u32.u64.compose %v1238, %v1237
    %v1240 = vextract.low.u32 %v1239
    %v1241 = vextract.high.u32 %v1239
    %v1242 = vmul.u32.u64.compose %v1238, %v1233
    %v1243 = vextract.low.u32 %v1242
    %v1244 = vextract.high.u32 %v1242
    %v1245 = vmul.u32 %v1238, %v1229
    %v1246 = vadd.s32 %v1241, %v1243
    %vm1247 = vc.u32 %v1241, %v1243
    %v1248 = vadd.s32 %v1244, 1
    %v1249 = vsel %vm1247, %v1248, %v1244
    %v1250 = vadd.s32 %v1245, %v1249
    %v1251 = vadd.s32 %v1250, 536870912
    %v1252 = vshrl.u32 %v1251, 30
    %v1253 = vshll.u32 %v1252, 30
    %v1254 = vsub.s32 %v1250, %v1253
    %vm1255 = vcmp.lt.s32.totalorder %v1254, 0
    %v1256 = vsub.s32 0, %v1254
    %v1257 = vsel %vm1255, %v1256, %v1254
    %v1258 = vclz %v1257
    %v1259 = vsub.s32 %v1258, 2
    %vm1260 = vcmp.gt.s32.totalorder 0, %v1259
    %v1261 = vsel %vm1260, 0, %v1259
    %v1262 = vsub.s32 32, %v1261
    %v1263 = vshll.u32 %v1254, %v1261
    %v1264 = vshrl.u32 %v1246, %v1262
    %v1265 = vor.u32 %v1263, %v1264
    %v1266 = vsub.s32 4294967266, %v1261
    %v1267 = vadd.s32 %v1266, 127
    %v1268 = vshll.u32 %v1267, 23
    %v1269 = vor.u32 4788187, %v1268
    %v1270 = vand.u32 2147483647, %v1269
    %v1272 = vcvt.s32.f32 %v1265
    %v1273 = vmul.f32 %v1272, %v1270
    %v1274 = vxor.u32 %v1273, 2147483648
    %v1275 = vsel %vm1192, %v1274, %v1273
    %v1276 = vsub.s32 4, %v1252
    %v1277 = vsel %vm1192, %v1276, %v1252
    %v1278 = vsel %vm1191, %v1189, %v1275
    %v1279 = vsel %vm1191, 0, %v1277
    %v1280 = vcosq.f32.pop %v1278
    %v1281 = vsinq.f32.pop %v1278
    %vm1282 = vweird.f32 %v1189
    %v1283 = vadd.s32 %v1279, 3
    %v1284 = vand.u32 %v1283, 3
    %vm1285 = vcmp.lt.s32.totalorder %v1284, 2
    %vm1286 = vcmp.eq.s32.totalorder %v1284, 0
    %v1287 = vxor.u32 %v1281, 2147483648
    %v1288 = vsel %vm1286, %v1280, %v1287
    %vm1289 = vcmp.eq.s32.totalorder %v1284, 2
    %v1290 = vxor.u32 %v1280, 2147483648
    %v1291 = vsel %vm1289, %v1290, %v1281
    %v1292 = vsel %vm1285, %v1288, %v1291
    %v1293 = vsel %vm1282, nan, %v1292
    %1294 = vrot.lane.b32.xlu0 %v1293, 1
    %v1295 = vpop.permute.xlu0 %1294
    %1296 = vrot.lane.b32.xlu0 %v1293, 2
    %v1297 = vpop.permute.xlu0 %1296
    %v1298 = vld [vmem:[#allocation5 + $0x9] sm:$0x1]
    %v1299 = vlaneseq
    %v1300 = vshrl.u32 %v1299, 7
    %v1301 = vsub.s32 0, %v1300
    %v1302 = vrot.slane %v1298, %v1301
    %v1303 = vmul.f32 %v1293, %v1302
    %v1304 = vld [vmem:[#allocation7 + $0x9] sm:$0x1]
    %v1305 = vlaneseq
    %v1306 = vshrl.u32 %v1305, 7
    %v1307 = vsub.s32 0, %v1306
    %v1308 = vrot.slane %v1304, %v1307
    %v1309 = vmul.f32 %v1295, %v1308
    %v1310 = vadd.f32 %v1303, %v1309
    %v1311 = vld [vmem:[#allocation8 + $0x9] sm:$0x1]
    %v1312 = vlaneseq
    %v1313 = vshrl.u32 %v1312, 7
    %v1314 = vsub.s32 0, %v1313
    %v1315 = vrot.slane %v1311, %v1314
    %v1316 = vmul.f32 %v1297, %v1315
    %v1317 = vadd.f32 %v1310, %v1316
    %v1318 = vld [vmem:[#allocation10 + $0x9] sm:$0x1]
    %v1319 = vlaneseq
    %v1320 = vshrl.u32 %v1319, 7
    %v1321 = vsub.s32 0, %v1320
    %v1322 = vrot.slane %v1318, %v1321
    %v1323 = vadd.f32 %v1317, %v1322
    %v1324 = vand.u32 2147483647, %v1323
    %vm1325 = vcmp.le.f32.partialorder %v1324, 0.7853982
    %vm1326 = vcmp.lt.s32.totalorder %v1323, 0
    %v1327 = vand.u32 %v1323, 2139095040
    %v1328 = vshrl.u32 %v1327, 23
    %v1329 = vsub.s32 %v1328, 127
    %v1330 = vand.u32 2147483647, %v1323
    %v1331 = vand.u32 %v1330, 8388607
    %v1332 = vor.u32 %v1331, 8388608
    %v1333 = vsub.s32 0, %v1332
    %v1334 = vadd.s32 %v1329, 1
    %vm1335 = vcmp.gt.s32.totalorder %v1334, 0
    %v1336 = vsel %vm1335, %v1334, 0
    %v1337 = vshrl.u32 %v1336, 5
    %v1338 = vand.u32 %v1336, 31
    %v1339 = vsub.s32 32, %v1338
    %v1340 = vshrl.u32 683565275, %v1339
    %v1341 = vshll.u32 683565275, %v1338
    %v1342 = vshrl.u32 2475754826, %v1339
    %v1343 = vor.u32 %v1341, %v1342
    %v1344 = vshll.u32 2475754826, %v1338
    %v1345 = vshrl.u32 2131351028, %v1339
    %v1346 = vor.u32 %v1344, %v1345
    %v1347 = vshll.u32 2131351028, %v1338
    %v1348 = vshrl.u32 2102212464, %v1339
    %v1349 = vor.u32 %v1347, %v1348
    %v1350 = vshll.u32 2102212464, %v1338
    %v1351 = vshrl.u32 920167782, %v1339
    %v1352 = vor.u32 %v1350, %v1351
    %v1353 = vshll.u32 920167782, %v1338
    %v1354 = vshrl.u32 1326507024, %v1339
    %v1355 = vor.u32 %v1353, %v1354
    %vm1356 = vcmp.lt.s32.totalorder %v1337, 1
    %vm1357 = vcmp.lt.s32.totalorder %v1337, 2
    %vm1358 = vcmp.lt.s32.totalorder %v1337, 3
    %vm1359 = vcmp.lt.s32.totalorder %v1337, 4
    %v1360 = vsel %vm1356, %v1340, %v1343
    %v1361 = vsel %vm1359, %v1349, 2102212464
    %v1362 = vsel %vm1358, %v1346, %v1361
    %v1363 = vsel %vm1357, %v1360, %v1362
    %v1364 = vsel %vm1356, %v1343, %v1346
    %v1365 = vsel %vm1359, %v1352, 920167782
    %v1366 = vsel %vm1358, %v1349, %v1365
    %v1367 = vsel %vm1357, %v1364, %v1366
    %v1368 = vsel %vm1356, %v1346, %v1349
    %v1369 = vsel %vm1359, %v1355, 1326507024
    %v1370 = vsel %vm1358, %v1352, %v1369
    %v1371 = vsel %vm1357, %v1368, %v1370
    %v1372 = vshll.u32 %v1332, 8
    %v1373 = vmul.u32.u64.compose %v1372, %v1371
    %v1374 = vextract.low.u32 %v1373
    %v1375 = vextract.high.u32 %v1373
    %v1376 = vmul.u32.u64.compose %v1372, %v1367
    %v1377 = vextract.low.u32 %v1376
    %v1378 = vextract.high.u32 %v1376
    %v1379 = vmul.u32 %v1372, %v1363
    %v1380 = vadd.s32 %v1375, %v1377
    %vm1381 = vc.u32 %v1375, %v1377
    %v1382 = vadd.s32 %v1378, 1
    %v1383 = vsel %vm1381, %v1382, %v1378
    %v1384 = vadd.s32 %v1379, %v1383
    %v1385 = vadd.s32 %v1384, 536870912
    %v1386 = vshrl.u32 %v1385, 30
    %v1387 = vshll.u32 %v1386, 30
    %v1388 = vsub.s32 %v1384, %v1387
    %vm1389 = vcmp.lt.s32.totalorder %v1388, 0
    %v1390 = vsub.s32 0, %v1388
    %v1391 = vsel %vm1389, %v1390, %v1388
    %v1392 = vclz %v1391
    %v1393 = vsub.s32 %v1392, 2
    %vm1394 = vcmp.gt.s32.totalorder 0, %v1393
    %v1395 = vsel %vm1394, 0, %v1393
    %v1396 = vsub.s32 32, %v1395
    %v1397 = vshll.u32 %v1388, %v1395
    %v1398 = vshrl.u32 %v1380, %v1396
    %v1399 = vor.u32 %v1397, %v1398
    %v1400 = vsub.s32 4294967266, %v1395
    %v1401 = vadd.s32 %v1400, 127
    %v1402 = vshll.u32 %v1401, 23
    %v1403 = vor.u32 4788187, %v1402
    %v1404 = vand.u32 2147483647, %v1403
    %v1406 = vcvt.s32.f32 %v1399
    %v1407 = vmul.f32 %v1406, %v1404
    %v1408 = vxor.u32 %v1407, 2147483648
    %v1409 = vsel %vm1326, %v1408, %v1407
    %v1410 = vsub.s32 4, %v1386
    %v1411 = vsel %vm1326, %v1410, %v1386
    %v1412 = vsel %vm1325, %v1323, %v1409
    %v1413 = vsel %vm1325, 0, %v1411
    %v1414 = vcosq.f32.pop %v1412
    %v1415 = vsinq.f32.pop %v1412
    %vm1416 = vweird.f32 %v1323
    %v1417 = vadd.s32 %v1413, 3
    %v1418 = vand.u32 %v1417, 3
    %vm1419 = vcmp.lt.s32.totalorder %v1418, 2
    %vm1420 = vcmp.eq.s32.totalorder %v1418, 0
    %v1421 = vxor.u32 %v1415, 2147483648
    %v1422 = vsel %vm1420, %v1414, %v1421
    %vm1423 = vcmp.eq.s32.totalorder %v1418, 2
    %v1424 = vxor.u32 %v1414, 2147483648
    %v1425 = vsel %vm1423, %v1424, %v1415
    %v1426 = vsel %vm1419, %v1422, %v1425
    %v1427 = vsel %vm1416, nan, %v1426
    %1428 = vrot.lane.b32.xlu0 %v1427, 1
    %v1429 = vpop.permute.xlu0 %1428
    %1430 = vrot.lane.b32.xlu0 %v1427, 2
    %v1431 = vpop.permute.xlu0 %1430
    %v1432 = vld [vmem:[#allocation5 + $0xa] sm:$0x1]
    %v1433 = vlaneseq
    %v1434 = vshrl.u32 %v1433, 7
    %v1435 = vsub.s32 0, %v1434
    %v1436 = vrot.slane %v1432, %v1435
    %v1437 = vmul.f32 %v1427, %v1436
    %v1438 = vld [vmem:[#allocation7 + $0xa] sm:$0x1]
    %v1439 = vlaneseq
    %v1440 = vshrl.u32 %v1439, 7
    %v1441 = vsub.s32 0, %v1440
    %v1442 = vrot.slane %v1438, %v1441
    %v1443 = vmul.f32 %v1429, %v1442
    %v1444 = vadd.f32 %v1437, %v1443
    %v1445 = vld [vmem:[#allocation8 + $0xa] sm:$0x1]
    %v1446 = vlaneseq
    %v1447 = vshrl.u32 %v1446, 7
    %v1448 = vsub.s32 0, %v1447
    %v1449 = vrot.slane %v1445, %v1448
    %v1450 = vmul.f32 %v1431, %v1449
    %v1451 = vadd.f32 %v1444, %v1450
    %v1452 = vld [vmem:[#allocation10 + $0xa] sm:$0x1]
    %v1453 = vlaneseq
    %v1454 = vshrl.u32 %v1453, 7
    %v1455 = vsub.s32 0, %v1454
    %v1456 = vrot.slane %v1452, %v1455
    %v1457 = vadd.f32 %v1451, %v1456
    %v1458 = vand.u32 2147483647, %v1457
    %vm1459 = vcmp.le.f32.partialorder %v1458, 0.7853982
    %vm1460 = vcmp.lt.s32.totalorder %v1457, 0
    %v1461 = vand.u32 %v1457, 2139095040
    %v1462 = vshrl.u32 %v1461, 23
    %v1463 = vsub.s32 %v1462, 127
    %v1464 = vand.u32 2147483647, %v1457
    %v1465 = vand.u32 %v1464, 8388607
    %v1466 = vor.u32 %v1465, 8388608
    %v1467 = vsub.s32 0, %v1466
    %v1468 = vadd.s32 %v1463, 1
    %vm1469 = vcmp.gt.s32.totalorder %v1468, 0
    %v1470 = vsel %vm1469, %v1468, 0
    %v1471 = vshrl.u32 %v1470, 5
    %v1472 = vand.u32 %v1470, 31
    %v1473 = vsub.s32 32, %v1472
    %v1474 = vshrl.u32 683565275, %v1473
    %v1475 = vshll.u32 683565275, %v1472
    %v1476 = vshrl.u32 2475754826, %v1473
    %v1477 = vor.u32 %v1475, %v1476
    %v1478 = vshll.u32 2475754826, %v1472
    %v1479 = vshrl.u32 2131351028, %v1473
    %v1480 = vor.u32 %v1478, %v1479
    %v1481 = vshll.u32 2131351028, %v1472
    %v1482 = vshrl.u32 2102212464, %v1473
    %v1483 = vor.u32 %v1481, %v1482
    %v1484 = vshll.u32 2102212464, %v1472
    %v1485 = vshrl.u32 920167782, %v1473
    %v1486 = vor.u32 %v1484, %v1485
    %v1487 = vshll.u32 920167782, %v1472
    %v1488 = vshrl.u32 1326507024, %v1473
    %v1489 = vor.u32 %v1487, %v1488
    %vm1490 = vcmp.lt.s32.totalorder %v1471, 1
    %vm1491 = vcmp.lt.s32.totalorder %v1471, 2
    %vm1492 = vcmp.lt.s32.totalorder %v1471, 3
    %vm1493 = vcmp.lt.s32.totalorder %v1471, 4
    %v1494 = vsel %vm1490, %v1474, %v1477
    %v1495 = vsel %vm1493, %v1483, 2102212464
    %v1496 = vsel %vm1492, %v1480, %v1495
    %v1497 = vsel %vm1491, %v1494, %v1496
    %v1498 = vsel %vm1490, %v1477, %v1480
    %v1499 = vsel %vm1493, %v1486, 920167782
    %v1500 = vsel %vm1492, %v1483, %v1499
    %v1501 = vsel %vm1491, %v1498, %v1500
    %v1502 = vsel %vm1490, %v1480, %v1483
    %v1503 = vsel %vm1493, %v1489, 1326507024
    %v1504 = vsel %vm1492, %v1486, %v1503
    %v1505 = vsel %vm1491, %v1502, %v1504
    %v1506 = vshll.u32 %v1466, 8
    %v1507 = vmul.u32.u64.compose %v1506, %v1505
    %v1508 = vextract.low.u32 %v1507
    %v1509 = vextract.high.u32 %v1507
    %v1510 = vmul.u32.u64.compose %v1506, %v1501
    %v1511 = vextract.low.u32 %v1510
    %v1512 = vextract.high.u32 %v1510
    %v1513 = vmul.u32 %v1506, %v1497
    %v1514 = vadd.s32 %v1509, %v1511
    %vm1515 = vc.u32 %v1509, %v1511
    %v1516 = vadd.s32 %v1512, 1
    %v1517 = vsel %vm1515, %v1516, %v1512
    %v1518 = vadd.s32 %v1513, %v1517
    %v1519 = vadd.s32 %v1518, 536870912
    %v1520 = vshrl.u32 %v1519, 30
    %v1521 = vshll.u32 %v1520, 30
    %v1522 = vsub.s32 %v1518, %v1521
    %vm1523 = vcmp.lt.s32.totalorder %v1522, 0
    %v1524 = vsub.s32 0, %v1522
    %v1525 = vsel %vm1523, %v1524, %v1522
    %v1526 = vclz %v1525
    %v1527 = vsub.s32 %v1526, 2
    %vm1528 = vcmp.gt.s32.totalorder 0, %v1527
    %v1529 = vsel %vm1528, 0, %v1527
    %v1530 = vsub.s32 32, %v1529
    %v1531 = vshll.u32 %v1522, %v1529
    %v1532 = vshrl.u32 %v1514, %v1530
    %v1533 = vor.u32 %v1531, %v1532
    %v1534 = vsub.s32 4294967266, %v1529
    %v1535 = vadd.s32 %v1534, 127
    %v1536 = vshll.u32 %v1535, 23
    %v1537 = vor.u32 4788187, %v1536
    %v1538 = vand.u32 2147483647, %v1537
    %v1540 = vcvt.s32.f32 %v1533
    %v1541 = vmul.f32 %v1540, %v1538
    %v1542 = vxor.u32 %v1541, 2147483648
    %v1543 = vsel %vm1460, %v1542, %v1541
    %v1544 = vsub.s32 4, %v1520
    %v1545 = vsel %vm1460, %v1544, %v1520
    %v1546 = vsel %vm1459, %v1457, %v1543
    %v1547 = vsel %vm1459, 0, %v1545
    %v1548 = vcosq.f32.pop %v1546
    %v1549 = vsinq.f32.pop %v1546
    %vm1550 = vweird.f32 %v1457
    %v1551 = vadd.s32 %v1547, 3
    %v1552 = vand.u32 %v1551, 3
    %vm1553 = vcmp.lt.s32.totalorder %v1552, 2
    %vm1554 = vcmp.eq.s32.totalorder %v1552, 0
    %v1555 = vxor.u32 %v1549, 2147483648
    %v1556 = vsel %vm1554, %v1548, %v1555
    %vm1557 = vcmp.eq.s32.totalorder %v1552, 2
    %v1558 = vxor.u32 %v1548, 2147483648
    %v1559 = vsel %vm1557, %v1558, %v1549
    %v1560 = vsel %vm1553, %v1556, %v1559
    %v1561 = vsel %vm1550, nan, %v1560
    %1562 = vrot.lane.b32.xlu0 %v1561, 1
    %v1563 = vpop.permute.xlu0 %1562
    %1564 = vrot.lane.b32.xlu0 %v1561, 2
    %v1565 = vpop.permute.xlu0 %1564
    %v1566 = vld [vmem:[#allocation5 + $0xb] sm:$0x1]
    %v1567 = vlaneseq
    %v1568 = vshrl.u32 %v1567, 7
    %v1569 = vsub.s32 0, %v1568
    %v1570 = vrot.slane %v1566, %v1569
    %v1571 = vmul.f32 %v1561, %v1570
    %v1572 = vld [vmem:[#allocation7 + $0xb] sm:$0x1]
    %v1573 = vlaneseq
    %v1574 = vshrl.u32 %v1573, 7
    %v1575 = vsub.s32 0, %v1574
    %v1576 = vrot.slane %v1572, %v1575
    %v1577 = vmul.f32 %v1563, %v1576
    %v1578 = vadd.f32 %v1571, %v1577
    %v1579 = vld [vmem:[#allocation8 + $0xb] sm:$0x1]
    %v1580 = vlaneseq
    %v1581 = vshrl.u32 %v1580, 7
    %v1582 = vsub.s32 0, %v1581
    %v1583 = vrot.slane %v1579, %v1582
    %v1584 = vmul.f32 %v1565, %v1583
    %v1585 = vadd.f32 %v1578, %v1584
    %v1586 = vld [vmem:[#allocation10 + $0xb] sm:$0x1]
    %v1587 = vlaneseq
    %v1588 = vshrl.u32 %v1587, 7
    %v1589 = vsub.s32 0, %v1588
    %v1590 = vrot.slane %v1586, %v1589
    %v1591 = vadd.f32 %v1585, %v1590
    %v1592 = vand.u32 2147483647, %v1591
    %vm1593 = vcmp.le.f32.partialorder %v1592, 0.7853982
    %vm1594 = vcmp.lt.s32.totalorder %v1591, 0
    %v1595 = vand.u32 %v1591, 2139095040
    %v1596 = vshrl.u32 %v1595, 23
    %v1597 = vsub.s32 %v1596, 127
    %v1598 = vand.u32 2147483647, %v1591
    %v1599 = vand.u32 %v1598, 8388607
    %v1600 = vor.u32 %v1599, 8388608
    %v1601 = vsub.s32 0, %v1600
    %v1602 = vadd.s32 %v1597, 1
    %vm1603 = vcmp.gt.s32.totalorder %v1602, 0
    %v1604 = vsel %vm1603, %v1602, 0
    %v1605 = vshrl.u32 %v1604, 5
    %v1606 = vand.u32 %v1604, 31
    %v1607 = vsub.s32 32, %v1606
    %v1608 = vshrl.u32 683565275, %v1607
    %v1609 = vshll.u32 683565275, %v1606
    %v1610 = vshrl.u32 2475754826, %v1607
    %v1611 = vor.u32 %v1609, %v1610
    %v1612 = vshll.u32 2475754826, %v1606
    %v1613 = vshrl.u32 2131351028, %v1607
    %v1614 = vor.u32 %v1612, %v1613
    %v1615 = vshll.u32 2131351028, %v1606
    %v1616 = vshrl.u32 2102212464, %v1607
    %v1617 = vor.u32 %v1615, %v1616
    %v1618 = vshll.u32 2102212464, %v1606
    %v1619 = vshrl.u32 920167782, %v1607
    %v1620 = vor.u32 %v1618, %v1619
    %v1621 = vshll.u32 920167782, %v1606
    %v1622 = vshrl.u32 1326507024, %v1607
    %v1623 = vor.u32 %v1621, %v1622
    %vm1624 = vcmp.lt.s32.totalorder %v1605, 1
    %vm1625 = vcmp.lt.s32.totalorder %v1605, 2
    %vm1626 = vcmp.lt.s32.totalorder %v1605, 3
    %vm1627 = vcmp.lt.s32.totalorder %v1605, 4
    %v1628 = vsel %vm1624, %v1608, %v1611
    %v1629 = vsel %vm1627, %v1617, 2102212464
    %v1630 = vsel %vm1626, %v1614, %v1629
    %v1631 = vsel %vm1625, %v1628, %v1630
    %v1632 = vsel %vm1624, %v1611, %v1614
    %v1633 = vsel %vm1627, %v1620, 920167782
    %v1634 = vsel %vm1626, %v1617, %v1633
    %v1635 = vsel %vm1625, %v1632, %v1634
    %v1636 = vsel %vm1624, %v1614, %v1617
    %v1637 = vsel %vm1627, %v1623, 1326507024
    %v1638 = vsel %vm1626, %v1620, %v1637
    %v1639 = vsel %vm1625, %v1636, %v1638
    %v1640 = vshll.u32 %v1600, 8
    %v1641 = vmul.u32.u64.compose %v1640, %v1639
    %v1642 = vextract.low.u32 %v1641
    %v1643 = vextract.high.u32 %v1641
    %v1644 = vmul.u32.u64.compose %v1640, %v1635
    %v1645 = vextract.low.u32 %v1644
    %v1646 = vextract.high.u32 %v1644
    %v1647 = vmul.u32 %v1640, %v1631
    %v1648 = vadd.s32 %v1643, %v1645
    %vm1649 = vc.u32 %v1643, %v1645
    %v1650 = vadd.s32 %v1646, 1
    %v1651 = vsel %vm1649, %v1650, %v1646
    %v1652 = vadd.s32 %v1647, %v1651
    %v1653 = vadd.s32 %v1652, 536870912
    %v1654 = vshrl.u32 %v1653, 30
    %v1655 = vshll.u32 %v1654, 30
    %v1656 = vsub.s32 %v1652, %v1655
    %vm1657 = vcmp.lt.s32.totalorder %v1656, 0
    %v1658 = vsub.s32 0, %v1656
    %v1659 = vsel %vm1657, %v1658, %v1656
    %v1660 = vclz %v1659
    %v1661 = vsub.s32 %v1660, 2
    %vm1662 = vcmp.gt.s32.totalorder 0, %v1661
    %v1663 = vsel %vm1662, 0, %v1661
    %v1664 = vsub.s32 32, %v1663
    %v1665 = vshll.u32 %v1656, %v1663
    %v1666 = vshrl.u32 %v1648, %v1664
    %v1667 = vor.u32 %v1665, %v1666
    %v1668 = vsub.s32 4294967266, %v1663
    %v1669 = vadd.s32 %v1668, 127
    %v1670 = vshll.u32 %v1669, 23
    %v1671 = vor.u32 4788187, %v1670
    %v1672 = vand.u32 2147483647, %v1671
    %v1674 = vcvt.s32.f32 %v1667
    %v1675 = vmul.f32 %v1674, %v1672
    %v1676 = vxor.u32 %v1675, 2147483648
    %v1677 = vsel %vm1594, %v1676, %v1675
    %v1678 = vsub.s32 4, %v1654
    %v1679 = vsel %vm1594, %v1678, %v1654
    %v1680 = vsel %vm1593, %v1591, %v1677
    %v1681 = vsel %vm1593, 0, %v1679
    %v1682 = vcosq.f32.pop %v1680
    %v1683 = vsinq.f32.pop %v1680
    %vm1684 = vweird.f32 %v1591
    %v1685 = vadd.s32 %v1681, 3
    %v1686 = vand.u32 %v1685, 3
    %vm1687 = vcmp.lt.s32.totalorder %v1686, 2
    %vm1688 = vcmp.eq.s32.totalorder %v1686, 0
    %v1689 = vxor.u32 %v1683, 2147483648
    %v1690 = vsel %vm1688, %v1682, %v1689
    %vm1691 = vcmp.eq.s32.totalorder %v1686, 2
    %v1692 = vxor.u32 %v1682, 2147483648
    %v1693 = vsel %vm1691, %v1692, %v1683
    %v1694 = vsel %vm1687, %v1690, %v1693
    %v1695 = vsel %vm1684, nan, %v1694
    %1696 = vrot.lane.b32.xlu0 %v1695, 1
    %v1697 = vpop.permute.xlu0 %1696
    %1698 = vrot.lane.b32.xlu0 %v1695, 2
    %v1699 = vpop.permute.xlu0 %1698
    %v1700 = vld [vmem:[#allocation5 + $0xc] sm:$0x1]
    %v1701 = vlaneseq
    %v1702 = vshrl.u32 %v1701, 7
    %v1703 = vsub.s32 0, %v1702
    %v1704 = vrot.slane %v1700, %v1703
    %v1705 = vmul.f32 %v1695, %v1704
    %v1706 = vld [vmem:[#allocation7 + $0xc] sm:$0x1]
    %v1707 = vlaneseq
    %v1708 = vshrl.u32 %v1707, 7
    %v1709 = vsub.s32 0, %v1708
    %v1710 = vrot.slane %v1706, %v1709
    %v1711 = vmul.f32 %v1697, %v1710
    %v1712 = vadd.f32 %v1705, %v1711
    %v1713 = vld [vmem:[#allocation8 + $0xc] sm:$0x1]
    %v1714 = vlaneseq
    %v1715 = vshrl.u32 %v1714, 7
    %v1716 = vsub.s32 0, %v1715
    %v1717 = vrot.slane %v1713, %v1716
    %v1718 = vmul.f32 %v1699, %v1717
    %v1719 = vadd.f32 %v1712, %v1718
    %v1720 = vld [vmem:[#allocation10 + $0xc] sm:$0x1]
    %v1721 = vlaneseq
    %v1722 = vshrl.u32 %v1721, 7
    %v1723 = vsub.s32 0, %v1722
    %v1724 = vrot.slane %v1720, %v1723
    %v1725 = vadd.f32 %v1719, %v1724
    %v1726 = vand.u32 2147483647, %v1725
    %vm1727 = vcmp.le.f32.partialorder %v1726, 0.7853982
    %vm1728 = vcmp.lt.s32.totalorder %v1725, 0
    %v1729 = vand.u32 %v1725, 2139095040
    %v1730 = vshrl.u32 %v1729, 23
    %v1731 = vsub.s32 %v1730, 127
    %v1732 = vand.u32 2147483647, %v1725
    %v1733 = vand.u32 %v1732, 8388607
    %v1734 = vor.u32 %v1733, 8388608
    %v1735 = vsub.s32 0, %v1734
    %v1736 = vadd.s32 %v1731, 1
    %vm1737 = vcmp.gt.s32.totalorder %v1736, 0
    %v1738 = vsel %vm1737, %v1736, 0
    %v1739 = vshrl.u32 %v1738, 5
    %v1740 = vand.u32 %v1738, 31
    %v1741 = vsub.s32 32, %v1740
    %v1742 = vshrl.u32 683565275, %v1741
    %v1743 = vshll.u32 683565275, %v1740
    %v1744 = vshrl.u32 2475754826, %v1741
    %v1745 = vor.u32 %v1743, %v1744
    %v1746 = vshll.u32 2475754826, %v1740
    %v1747 = vshrl.u32 2131351028, %v1741
    %v1748 = vor.u32 %v1746, %v1747
    %v1749 = vshll.u32 2131351028, %v1740
    %v1750 = vshrl.u32 2102212464, %v1741
    %v1751 = vor.u32 %v1749, %v1750
    %v1752 = vshll.u32 2102212464, %v1740
    %v1753 = vshrl.u32 920167782, %v1741
    %v1754 = vor.u32 %v1752, %v1753
    %v1755 = vshll.u32 920167782, %v1740
    %v1756 = vshrl.u32 1326507024, %v1741
    %v1757 = vor.u32 %v1755, %v1756
    %vm1758 = vcmp.lt.s32.totalorder %v1739, 1
    %vm1759 = vcmp.lt.s32.totalorder %v1739, 2
    %vm1760 = vcmp.lt.s32.totalorder %v1739, 3
    %vm1761 = vcmp.lt.s32.totalorder %v1739, 4
    %v1762 = vsel %vm1758, %v1742, %v1745
    %v1763 = vsel %vm1761, %v1751, 2102212464
    %v1764 = vsel %vm1760, %v1748, %v1763
    %v1765 = vsel %vm1759, %v1762, %v1764
    %v1766 = vsel %vm1758, %v1745, %v1748
    %v1767 = vsel %vm1761, %v1754, 920167782
    %v1768 = vsel %vm1760, %v1751, %v1767
    %v1769 = vsel %vm1759, %v1766, %v1768
    %v1770 = vsel %vm1758, %v1748, %v1751
    %v1771 = vsel %vm1761, %v1757, 1326507024
    %v1772 = vsel %vm1760, %v1754, %v1771
    %v1773 = vsel %vm1759, %v1770, %v1772
    %v1774 = vshll.u32 %v1734, 8
    %v1775 = vmul.u32.u64.compose %v1774, %v1773
    %v1776 = vextract.low.u32 %v1775
    %v1777 = vextract.high.u32 %v1775
    %v1778 = vmul.u32.u64.compose %v1774, %v1769
    %v1779 = vextract.low.u32 %v1778
    %v1780 = vextract.high.u32 %v1778
    %v1781 = vmul.u32 %v1774, %v1765
    %v1782 = vadd.s32 %v1777, %v1779
    %vm1783 = vc.u32 %v1777, %v1779
    %v1784 = vadd.s32 %v1780, 1
    %v1785 = vsel %vm1783, %v1784, %v1780
    %v1786 = vadd.s32 %v1781, %v1785
    %v1787 = vadd.s32 %v1786, 536870912
    %v1788 = vshrl.u32 %v1787, 30
    %v1789 = vshll.u32 %v1788, 30
    %v1790 = vsub.s32 %v1786, %v1789
    %vm1791 = vcmp.lt.s32.totalorder %v1790, 0
    %v1792 = vsub.s32 0, %v1790
    %v1793 = vsel %vm1791, %v1792, %v1790
    %v1794 = vclz %v1793
    %v1795 = vsub.s32 %v1794, 2
    %vm1796 = vcmp.gt.s32.totalorder 0, %v1795
    %v1797 = vsel %vm1796, 0, %v1795
    %v1798 = vsub.s32 32, %v1797
    %v1799 = vshll.u32 %v1790, %v1797
    %v1800 = vshrl.u32 %v1782, %v1798
    %v1801 = vor.u32 %v1799, %v1800
    %v1802 = vsub.s32 4294967266, %v1797
    %v1803 = vadd.s32 %v1802, 127
    %v1804 = vshll.u32 %v1803, 23
    %v1805 = vor.u32 4788187, %v1804
    %v1806 = vand.u32 2147483647, %v1805
    %v1808 = vcvt.s32.f32 %v1801
    %v1809 = vmul.f32 %v1808, %v1806
    %v1810 = vxor.u32 %v1809, 2147483648
    %v1811 = vsel %vm1728, %v1810, %v1809
    %v1812 = vsub.s32 4, %v1788
    %v1813 = vsel %vm1728, %v1812, %v1788
    %v1814 = vsel %vm1727, %v1725, %v1811
    %v1815 = vsel %vm1727, 0, %v1813
    %v1816 = vcosq.f32.pop %v1814
    %v1817 = vsinq.f32.pop %v1814
    %vm1818 = vweird.f32 %v1725
    %v1819 = vadd.s32 %v1815, 3
    %v1820 = vand.u32 %v1819, 3
    %vm1821 = vcmp.lt.s32.totalorder %v1820, 2
    %vm1822 = vcmp.eq.s32.totalorder %v1820, 0
    %v1823 = vxor.u32 %v1817, 2147483648
    %v1824 = vsel %vm1822, %v1816, %v1823
    %vm1825 = vcmp.eq.s32.totalorder %v1820, 2
    %v1826 = vxor.u32 %v1816, 2147483648
    %v1827 = vsel %vm1825, %v1826, %v1817
    %v1828 = vsel %vm1821, %v1824, %v1827
    %v1829 = vsel %vm1818, nan, %v1828
    %1830 = vrot.lane.b32.xlu0 %v1829, 1
    %v1831 = vpop.permute.xlu0 %1830
    %1832 = vrot.lane.b32.xlu0 %v1829, 2
    %v1833 = vpop.permute.xlu0 %1832
    %v1834 = vld [vmem:[#allocation5 + $0xd] sm:$0x1]
    %v1835 = vlaneseq
    %v1836 = vshrl.u32 %v1835, 7
    %v1837 = vsub.s32 0, %v1836
    %v1838 = vrot.slane %v1834, %v1837
    %v1839 = vmul.f32 %v1829, %v1838
    %v1840 = vld [vmem:[#allocation7 + $0xd] sm:$0x1]
    %v1841 = vlaneseq
    %v1842 = vshrl.u32 %v1841, 7
    %v1843 = vsub.s32 0, %v1842
    %v1844 = vrot.slane %v1840, %v1843
    %v1845 = vmul.f32 %v1831, %v1844
    %v1846 = vadd.f32 %v1839, %v1845
    %v1847 = vld [vmem:[#allocation8 + $0xd] sm:$0x1]
    %v1848 = vlaneseq
    %v1849 = vshrl.u32 %v1848, 7
    %v1850 = vsub.s32 0, %v1849
    %v1851 = vrot.slane %v1847, %v1850
    %v1852 = vmul.f32 %v1833, %v1851
    %v1853 = vadd.f32 %v1846, %v1852
    %v1854 = vld [vmem:[#allocation10 + $0xd] sm:$0x1]
    %v1855 = vlaneseq
    %v1856 = vshrl.u32 %v1855, 7
    %v1857 = vsub.s32 0, %v1856
    %v1858 = vrot.slane %v1854, %v1857
    %v1859 = vadd.f32 %v1853, %v1858
    %v1860 = vand.u32 2147483647, %v1859
    %vm1861 = vcmp.le.f32.partialorder %v1860, 0.7853982
    %vm1862 = vcmp.lt.s32.totalorder %v1859, 0
    %v1863 = vand.u32 %v1859, 2139095040
    %v1864 = vshrl.u32 %v1863, 23
    %v1865 = vsub.s32 %v1864, 127
    %v1866 = vand.u32 2147483647, %v1859
    %v1867 = vand.u32 %v1866, 8388607
    %v1868 = vor.u32 %v1867, 8388608
    %v1869 = vsub.s32 0, %v1868
    %v1870 = vadd.s32 %v1865, 1
    %vm1871 = vcmp.gt.s32.totalorder %v1870, 0
    %v1872 = vsel %vm1871, %v1870, 0
    %v1873 = vshrl.u32 %v1872, 5
    %v1874 = vand.u32 %v1872, 31
    %v1875 = vsub.s32 32, %v1874
    %v1876 = vshrl.u32 683565275, %v1875
    %v1877 = vshll.u32 683565275, %v1874
    %v1878 = vshrl.u32 2475754826, %v1875
    %v1879 = vor.u32 %v1877, %v1878
    %v1880 = vshll.u32 2475754826, %v1874
    %v1881 = vshrl.u32 2131351028, %v1875
    %v1882 = vor.u32 %v1880, %v1881
    %v1883 = vshll.u32 2131351028, %v1874
    %v1884 = vshrl.u32 2102212464, %v1875
    %v1885 = vor.u32 %v1883, %v1884
    %v1886 = vshll.u32 2102212464, %v1874
    %v1887 = vshrl.u32 920167782, %v1875
    %v1888 = vor.u32 %v1886, %v1887
    %v1889 = vshll.u32 920167782, %v1874
    %v1890 = vshrl.u32 1326507024, %v1875
    %v1891 = vor.u32 %v1889, %v1890
    %vm1892 = vcmp.lt.s32.totalorder %v1873, 1
    %vm1893 = vcmp.lt.s32.totalorder %v1873, 2
    %vm1894 = vcmp.lt.s32.totalorder %v1873, 3
    %vm1895 = vcmp.lt.s32.totalorder %v1873, 4
    %v1896 = vsel %vm1892, %v1876, %v1879
    %v1897 = vsel %vm1895, %v1885, 2102212464
    %v1898 = vsel %vm1894, %v1882, %v1897
    %v1899 = vsel %vm1893, %v1896, %v1898
    %v1900 = vsel %vm1892, %v1879, %v1882
    %v1901 = vsel %vm1895, %v1888, 920167782
    %v1902 = vsel %vm1894, %v1885, %v1901
    %v1903 = vsel %vm1893, %v1900, %v1902
    %v1904 = vsel %vm1892, %v1882, %v1885
    %v1905 = vsel %vm1895, %v1891, 1326507024
    %v1906 = vsel %vm1894, %v1888, %v1905
    %v1907 = vsel %vm1893, %v1904, %v1906
    %v1908 = vshll.u32 %v1868, 8
    %v1909 = vmul.u32.u64.compose %v1908, %v1907
    %v1910 = vextract.low.u32 %v1909
    %v1911 = vextract.high.u32 %v1909
    %v1912 = vmul.u32.u64.compose %v1908, %v1903
    %v1913 = vextract.low.u32 %v1912
    %v1914 = vextract.high.u32 %v1912
    %v1915 = vmul.u32 %v1908, %v1899
    %v1916 = vadd.s32 %v1911, %v1913
    %vm1917 = vc.u32 %v1911, %v1913
    %v1918 = vadd.s32 %v1914, 1
    %v1919 = vsel %vm1917, %v1918, %v1914
    %v1920 = vadd.s32 %v1915, %v1919
    %v1921 = vadd.s32 %v1920, 536870912
    %v1922 = vshrl.u32 %v1921, 30
    %v1923 = vshll.u32 %v1922, 30
    %v1924 = vsub.s32 %v1920, %v1923
    %vm1925 = vcmp.lt.s32.totalorder %v1924, 0
    %v1926 = vsub.s32 0, %v1924
    %v1927 = vsel %vm1925, %v1926, %v1924
    %v1928 = vclz %v1927
    %v1929 = vsub.s32 %v1928, 2
    %vm1930 = vcmp.gt.s32.totalorder 0, %v1929
    %v1931 = vsel %vm1930, 0, %v1929
    %v1932 = vsub.s32 32, %v1931
    %v1933 = vshll.u32 %v1924, %v1931
    %v1934 = vshrl.u32 %v1916, %v1932
    %v1935 = vor.u32 %v1933, %v1934
    %v1936 = vsub.s32 4294967266, %v1931
    %v1937 = vadd.s32 %v1936, 127
    %v1938 = vshll.u32 %v1937, 23
    %v1939 = vor.u32 4788187, %v1938
    %v1940 = vand.u32 2147483647, %v1939
    %v1942 = vcvt.s32.f32 %v1935
    %v1943 = vmul.f32 %v1942, %v1940
    %v1944 = vxor.u32 %v1943, 2147483648
    %v1945 = vsel %vm1862, %v1944, %v1943
    %v1946 = vsub.s32 4, %v1922
    %v1947 = vsel %vm1862, %v1946, %v1922
    %v1948 = vsel %vm1861, %v1859, %v1945
    %v1949 = vsel %vm1861, 0, %v1947
    %v1950 = vcosq.f32.pop %v1948
    %v1951 = vsinq.f32.pop %v1948
    %vm1952 = vweird.f32 %v1859
    %v1953 = vadd.s32 %v1949, 3
    %v1954 = vand.u32 %v1953, 3
    %vm1955 = vcmp.lt.s32.totalorder %v1954, 2
    %vm1956 = vcmp.eq.s32.totalorder %v1954, 0
    %v1957 = vxor.u32 %v1951, 2147483648
    %v1958 = vsel %vm1956, %v1950, %v1957
    %vm1959 = vcmp.eq.s32.totalorder %v1954, 2
    %v1960 = vxor.u32 %v1950, 2147483648
    %v1961 = vsel %vm1959, %v1960, %v1951
    %v1962 = vsel %vm1955, %v1958, %v1961
    %v1963 = vsel %vm1952, nan, %v1962
    %1964 = vrot.lane.b32.xlu0 %v1963, 1
    %v1965 = vpop.permute.xlu0 %1964
    %1966 = vrot.lane.b32.xlu0 %v1963, 2
    %v1967 = vpop.permute.xlu0 %1966
    %v1968 = vld [vmem:[#allocation5 + $0xe] sm:$0x1]
    %v1969 = vlaneseq
    %v1970 = vshrl.u32 %v1969, 7
    %v1971 = vsub.s32 0, %v1970
    %v1972 = vrot.slane %v1968, %v1971
    %v1973 = vmul.f32 %v1963, %v1972
    %v1974 = vld [vmem:[#allocation7 + $0xe] sm:$0x1]
    %v1975 = vlaneseq
    %v1976 = vshrl.u32 %v1975, 7
    %v1977 = vsub.s32 0, %v1976
    %v1978 = vrot.slane %v1974, %v1977
    %v1979 = vmul.f32 %v1965, %v1978
    %v1980 = vadd.f32 %v1973, %v1979
    %v1981 = vld [vmem:[#allocation8 + $0xe] sm:$0x1]
    %v1982 = vlaneseq
    %v1983 = vshrl.u32 %v1982, 7
    %v1984 = vsub.s32 0, %v1983
    %v1985 = vrot.slane %v1981, %v1984
    %v1986 = vmul.f32 %v1967, %v1985
    %v1987 = vadd.f32 %v1980, %v1986
    %v1988 = vld [vmem:[#allocation10 + $0xe] sm:$0x1]
    %v1989 = vlaneseq
    %v1990 = vshrl.u32 %v1989, 7
    %v1991 = vsub.s32 0, %v1990
    %v1992 = vrot.slane %v1988, %v1991
    %v1993 = vadd.f32 %v1987, %v1992
    %v1994 = vand.u32 2147483647, %v1993
    %vm1995 = vcmp.le.f32.partialorder %v1994, 0.7853982
    %vm1996 = vcmp.lt.s32.totalorder %v1993, 0
    %v1997 = vand.u32 %v1993, 2139095040
    %v1998 = vshrl.u32 %v1997, 23
    %v1999 = vsub.s32 %v1998, 127
    %v2000 = vand.u32 2147483647, %v1993
    %v2001 = vand.u32 %v2000, 8388607
    %v2002 = vor.u32 %v2001, 8388608
    %v2003 = vsub.s32 0, %v2002
    %v2004 = vadd.s32 %v1999, 1
    %vm2005 = vcmp.gt.s32.totalorder %v2004, 0
    %v2006 = vsel %vm2005, %v2004, 0
    %v2007 = vshrl.u32 %v2006, 5
    %v2008 = vand.u32 %v2006, 31
    %v2009 = vsub.s32 32, %v2008
    %v2010 = vshrl.u32 683565275, %v2009
    %v2011 = vshll.u32 683565275, %v2008
    %v2012 = vshrl.u32 2475754826, %v2009
    %v2013 = vor.u32 %v2011, %v2012
    %v2014 = vshll.u32 2475754826, %v2008
    %v2015 = vshrl.u32 2131351028, %v2009
    %v2016 = vor.u32 %v2014, %v2015
    %v2017 = vshll.u32 2131351028, %v2008
    %v2018 = vshrl.u32 2102212464, %v2009
    %v2019 = vor.u32 %v2017, %v2018
    %v2020 = vshll.u32 2102212464, %v2008
    %v2021 = vshrl.u32 920167782, %v2009
    %v2022 = vor.u32 %v2020, %v2021
    %v2023 = vshll.u32 920167782, %v2008
    %v2024 = vshrl.u32 1326507024, %v2009
    %v2025 = vor.u32 %v2023, %v2024
    %vm2026 = vcmp.lt.s32.totalorder %v2007, 1
    %vm2027 = vcmp.lt.s32.totalorder %v2007, 2
    %vm2028 = vcmp.lt.s32.totalorder %v2007, 3
    %vm2029 = vcmp.lt.s32.totalorder %v2007, 4
    %v2030 = vsel %vm2026, %v2010, %v2013
    %v2031 = vsel %vm2029, %v2019, 2102212464
    %v2032 = vsel %vm2028, %v2016, %v2031
    %v2033 = vsel %vm2027, %v2030, %v2032
    %v2034 = vsel %vm2026, %v2013, %v2016
    %v2035 = vsel %vm2029, %v2022, 920167782
    %v2036 = vsel %vm2028, %v2019, %v2035
    %v2037 = vsel %vm2027, %v2034, %v2036
    %v2038 = vsel %vm2026, %v2016, %v2019
    %v2039 = vsel %vm2029, %v2025, 1326507024
    %v2040 = vsel %vm2028, %v2022, %v2039
    %v2041 = vsel %vm2027, %v2038, %v2040
    %v2042 = vshll.u32 %v2002, 8
    %v2043 = vmul.u32.u64.compose %v2042, %v2041
    %v2044 = vextract.low.u32 %v2043
    %v2045 = vextract.high.u32 %v2043
    %v2046 = vmul.u32.u64.compose %v2042, %v2037
    %v2047 = vextract.low.u32 %v2046
    %v2048 = vextract.high.u32 %v2046
    %v2049 = vmul.u32 %v2042, %v2033
    %v2050 = vadd.s32 %v2045, %v2047
    %vm2051 = vc.u32 %v2045, %v2047
    %v2052 = vadd.s32 %v2048, 1
    %v2053 = vsel %vm2051, %v2052, %v2048
    %v2054 = vadd.s32 %v2049, %v2053
    %v2055 = vadd.s32 %v2054, 536870912
    %v2056 = vshrl.u32 %v2055, 30
    %v2057 = vshll.u32 %v2056, 30
    %v2058 = vsub.s32 %v2054, %v2057
    %vm2059 = vcmp.lt.s32.totalorder %v2058, 0
    %v2060 = vsub.s32 0, %v2058
    %v2061 = vsel %vm2059, %v2060, %v2058
    %v2062 = vclz %v2061
    %v2063 = vsub.s32 %v2062, 2
    %vm2064 = vcmp.gt.s32.totalorder 0, %v2063
    %v2065 = vsel %vm2064, 0, %v2063
    %v2066 = vsub.s32 32, %v2065
    %v2067 = vshll.u32 %v2058, %v2065
    %v2068 = vshrl.u32 %v2050, %v2066
    %v2069 = vor.u32 %v2067, %v2068
    %v2070 = vsub.s32 4294967266, %v2065
    %v2071 = vadd.s32 %v2070, 127
    %v2072 = vshll.u32 %v2071, 23
    %v2073 = vor.u32 4788187, %v2072
    %v2074 = vand.u32 2147483647, %v2073
    %v2076 = vcvt.s32.f32 %v2069
    %v2077 = vmul.f32 %v2076, %v2074
    %v2078 = vxor.u32 %v2077, 2147483648
    %v2079 = vsel %vm1996, %v2078, %v2077
    %v2080 = vsub.s32 4, %v2056
    %v2081 = vsel %vm1996, %v2080, %v2056
    %v2082 = vsel %vm1995, %v1993, %v2079
    %v2083 = vsel %vm1995, 0, %v2081
    %v2084 = vcosq.f32.pop %v2082
    %v2085 = vsinq.f32.pop %v2082
    %vm2086 = vweird.f32 %v1993
    %v2087 = vadd.s32 %v2083, 3
    %v2088 = vand.u32 %v2087, 3
    %vm2089 = vcmp.lt.s32.totalorder %v2088, 2
    %vm2090 = vcmp.eq.s32.totalorder %v2088, 0
    %v2091 = vxor.u32 %v2085, 2147483648
    %v2092 = vsel %vm2090, %v2084, %v2091
    %vm2093 = vcmp.eq.s32.totalorder %v2088, 2
    %v2094 = vxor.u32 %v2084, 2147483648
    %v2095 = vsel %vm2093, %v2094, %v2085
    %v2096 = vsel %vm2089, %v2092, %v2095
    %v2097 = vsel %vm2086, nan, %v2096
    %2098 = vrot.lane.b32.xlu0 %v2097, 1
    %v2099 = vpop.permute.xlu0 %2098
    %2100 = vrot.lane.b32.xlu0 %v2097, 2
    %v2101 = vpop.permute.xlu0 %2100
    %v2102 = vld [vmem:[#allocation5 + $0xf] sm:$0x1]
    %v2103 = vlaneseq
    %v2104 = vshrl.u32 %v2103, 7
    %v2105 = vsub.s32 0, %v2104
    %v2106 = vrot.slane %v2102, %v2105
    %v2107 = vmul.f32 %v2097, %v2106
    %v2108 = vld [vmem:[#allocation7 + $0xf] sm:$0x1]
    %v2109 = vlaneseq
    %v2110 = vshrl.u32 %v2109, 7
    %v2111 = vsub.s32 0, %v2110
    %v2112 = vrot.slane %v2108, %v2111
    %v2113 = vmul.f32 %v2099, %v2112
    %v2114 = vadd.f32 %v2107, %v2113
    %v2115 = vld [vmem:[#allocation8 + $0xf] sm:$0x1]
    %v2116 = vlaneseq
    %v2117 = vshrl.u32 %v2116, 7
    %v2118 = vsub.s32 0, %v2117
    %v2119 = vrot.slane %v2115, %v2118
    %v2120 = vmul.f32 %v2101, %v2119
    %v2121 = vadd.f32 %v2114, %v2120
    %v2122 = vld [vmem:[#allocation10 + $0xf] sm:$0x1]
    %v2123 = vlaneseq
    %v2124 = vshrl.u32 %v2123, 7
    %v2125 = vsub.s32 0, %v2124
    %v2126 = vrot.slane %v2122, %v2125
    %v2127 = vadd.f32 %v2121, %v2126
    %v2128 = vand.u32 2147483647, %v2127
    %vm2129 = vcmp.le.f32.partialorder %v2128, 0.7853982
    %vm2130 = vcmp.lt.s32.totalorder %v2127, 0
    %v2131 = vand.u32 %v2127, 2139095040
    %v2132 = vshrl.u32 %v2131, 23
    %v2133 = vsub.s32 %v2132, 127
    %v2134 = vand.u32 2147483647, %v2127
    %v2135 = vand.u32 %v2134, 8388607
    %v2136 = vor.u32 %v2135, 8388608
    %v2137 = vsub.s32 0, %v2136
    %v2138 = vadd.s32 %v2133, 1
    %vm2139 = vcmp.gt.s32.totalorder %v2138, 0
    %v2140 = vsel %vm2139, %v2138, 0
    %v2141 = vshrl.u32 %v2140, 5
    %v2142 = vand.u32 %v2140, 31
    %v2143 = vsub.s32 32, %v2142
    %v2144 = vshrl.u32 683565275, %v2143
    %v2145 = vshll.u32 683565275, %v2142
    %v2146 = vshrl.u32 2475754826, %v2143
    %v2147 = vor.u32 %v2145, %v2146
    %v2148 = vshll.u32 2475754826, %v2142
    %v2149 = vshrl.u32 2131351028, %v2143
    %v2150 = vor.u32 %v2148, %v2149
    %v2151 = vshll.u32 2131351028, %v2142
    %v2152 = vshrl.u32 2102212464, %v2143
    %v2153 = vor.u32 %v2151, %v2152
    %v2154 = vshll.u32 2102212464, %v2142
    %v2155 = vshrl.u32 920167782, %v2143
    %v2156 = vor.u32 %v2154, %v2155
    %v2157 = vshll.u32 920167782, %v2142
    %v2158 = vshrl.u32 1326507024, %v2143
    %v2159 = vor.u32 %v2157, %v2158
    %vm2160 = vcmp.lt.s32.totalorder %v2141, 1
    %vm2161 = vcmp.lt.s32.totalorder %v2141, 2
    %vm2162 = vcmp.lt.s32.totalorder %v2141, 3
    %vm2163 = vcmp.lt.s32.totalorder %v2141, 4
    %v2164 = vsel %vm2160, %v2144, %v2147
    %v2165 = vsel %vm2163, %v2153, 2102212464
    %v2166 = vsel %vm2162, %v2150, %v2165
    %v2167 = vsel %vm2161, %v2164, %v2166
    %v2168 = vsel %vm2160, %v2147, %v2150
    %v2169 = vsel %vm2163, %v2156, 920167782
    %v2170 = vsel %vm2162, %v2153, %v2169
    %v2171 = vsel %vm2161, %v2168, %v2170
    %v2172 = vsel %vm2160, %v2150, %v2153
    %v2173 = vsel %vm2163, %v2159, 1326507024
    %v2174 = vsel %vm2162, %v2156, %v2173
    %v2175 = vsel %vm2161, %v2172, %v2174
    %v2176 = vshll.u32 %v2136, 8
    %v2177 = vmul.u32.u64.compose %v2176, %v2175
    %v2178 = vextract.low.u32 %v2177
    %v2179 = vextract.high.u32 %v2177
    %v2180 = vmul.u32.u64.compose %v2176, %v2171
    %v2181 = vextract.low.u32 %v2180
    %v2182 = vextract.high.u32 %v2180
    %v2183 = vmul.u32 %v2176, %v2167
    %v2184 = vadd.s32 %v2179, %v2181
    %vm2185 = vc.u32 %v2179, %v2181
    %v2186 = vadd.s32 %v2182, 1
    %v2187 = vsel %vm2185, %v2186, %v2182
    %v2188 = vadd.s32 %v2183, %v2187
    %v2189 = vadd.s32 %v2188, 536870912
    %v2190 = vshrl.u32 %v2189, 30
    %v2191 = vshll.u32 %v2190, 30
    %v2192 = vsub.s32 %v2188, %v2191
    %vm2193 = vcmp.lt.s32.totalorder %v2192, 0
    %v2194 = vsub.s32 0, %v2192
    %v2195 = vsel %vm2193, %v2194, %v2192
    %v2196 = vclz %v2195
    %v2197 = vsub.s32 %v2196, 2
    %vm2198 = vcmp.gt.s32.totalorder 0, %v2197
    %v2199 = vsel %vm2198, 0, %v2197
    %v2200 = vsub.s32 32, %v2199
    %v2201 = vshll.u32 %v2192, %v2199
    %v2202 = vshrl.u32 %v2184, %v2200
    %v2203 = vor.u32 %v2201, %v2202
    %v2204 = vsub.s32 4294967266, %v2199
    %v2205 = vadd.s32 %v2204, 127
    %v2206 = vshll.u32 %v2205, 23
    %v2207 = vor.u32 4788187, %v2206
    %v2208 = vand.u32 2147483647, %v2207
    %v2210 = vcvt.s32.f32 %v2203
    %v2211 = vmul.f32 %v2210, %v2208
    %v2212 = vxor.u32 %v2211, 2147483648
    %v2213 = vsel %vm2130, %v2212, %v2211
    %v2214 = vsub.s32 4, %v2190
    %v2215 = vsel %vm2130, %v2214, %v2190
    %v2216 = vsel %vm2129, %v2127, %v2213
    %v2217 = vsel %vm2129, 0, %v2215
    %v2218 = vcosq.f32.pop %v2216
    %v2219 = vsinq.f32.pop %v2216
    %vm2220 = vweird.f32 %v2127
    %v2221 = vadd.s32 %v2217, 3
    %v2222 = vand.u32 %v2221, 3
    %vm2223 = vcmp.lt.s32.totalorder %v2222, 2
    %vm2224 = vcmp.eq.s32.totalorder %v2222, 0
    %v2225 = vxor.u32 %v2219, 2147483648
    %v2226 = vsel %vm2224, %v2218, %v2225
    %vm2227 = vcmp.eq.s32.totalorder %v2222, 2
    %v2228 = vxor.u32 %v2218, 2147483648
    %v2229 = vsel %vm2227, %v2228, %v2219
    %v2230 = vsel %vm2223, %v2226, %v2229
    %v2231 = vsel %vm2220, nan, %v2230
    %2232 = vst [vmem:[#allocation11] sm:$0xff] %v2231
    // Predicated region
    $region42: #{tpu_custom_call.1} parent=1 // pred_check
      _
    $region43: #{tpu_custom_call.1} parent=1 // pred_check_branch
      %2234 = sbr.rel (0) target = $region45
    $region44: #{tpu_custom_call.1} parent=1 // pred_region
      %s2236 = ssub.s32 128, 128
      %2237 = vsyncadd [#allocation4], %s2236
      %s2239 = sshll.u32 [#allocation11], 4
      %s2240 = int_to_ptr.vmem [resolvable:$true] %s2239
      %2242 = dma.vmem_to_hbm [thread:$0]  %s2240, 128, %s5, [#allocation4]
    $region45: #{tpu_custom_call.1} parent=1 // pred_fallthru
      _
    // Predicated region
    $region46: #{tpu_custom_call.1} parent=1 // pred_check
      _
    $region47: #{tpu_custom_call.1} parent=1 // pred_check_branch
      %2244 = sbr.rel (0) target = $region49
    $region48: #{tpu_custom_call.1} parent=1 // pred_region
      %2245 = dma.done [#allocation4], 128
    $region49: #{tpu_custom_call.1} parent=1 // pred_fallthru
      _
    %2246 = vsyncpa [#allocation3], 1
    %2247 = vsyncpa [#allocation6], 1
    %2248 = vsyncpa [#allocation9], 1
    %2249 = vsyncpa [#allocation4], 1

</llo_original>
